<compile_context>
chip_gen: v5e
topology: v5e:2x2
jax: 0.10.0
libtpu: 0.0.40
codegen_flags: <defaults>
</compile_context>

<pallas_src>
import functools

import jax
import jax.numpy as jnp
from jax.experimental import pallas as pl
from jax.experimental.pallas import tpu as pltpu  # noqa: F401  (TPU backend assumed)

# ---- synthetic "config.hidden_size" style constants (small shapes) ----
VOCAB = 64
HIDDEN = 32
N_HEADS = 2
HEAD_DIM = HIDDEN // N_HEADS
FFN = 64
N_LAYERS = 2
N_CLASSES = 36
MAX_SEQ = 16
LN_EPS = 1e-12
ATTN_SCALE = 1.0 / (HEAD_DIM ** 0.5)


# ----------------------------- fused Pallas kernel -----------------------------

def _fused_bert_mean_kernel(
    h0_ref, mask_ref,
    emb_g_ref, emb_b_ref,
    wqkv_ref, bqkv_ref, wo_ref, bo_ref,
    ln1g_ref, ln1b_ref,
    w1_ref, b1_ref, w2_ref, b2_ref,
    ln2g_ref, ln2b_ref,
    cls_w_ref, cls_b_ref,
    o_ref,
    *, batch, seq,
):
    def layer_norm(x, g, b):
        mu = jnp.mean(x, axis=-1, keepdims=True)
        var = jnp.mean(jnp.square(x - mu), axis=-1, keepdims=True)
        return (x - mu) * jax.lax.rsqrt(var + LN_EPS) * g + b

    mask = mask_ref[...]                              # (B, S) float, 1=valid 0=pad
    attn_bias = ((mask - 1.0) * 1e9)[:, None, :]      # (B, 1, S) additive key mask

    # Embedding layernorm.
    h = layer_norm(h0_ref[...], emb_g_ref[...], emb_b_ref[...])      # (B*S, H)

    # Encoder layers: fully unrolled, everything VMEM/vreg resident.
    for l in range(N_LAYERS):
        # Fused QKV projection: one (B*S, H) @ (H, 3H) matmul.
        qkv = jnp.dot(h, wqkv_ref[l], preferred_element_type=jnp.float32) + bqkv_ref[l]
        q = qkv[:, 0 * HIDDEN:1 * HIDDEN].reshape(batch, seq, HIDDEN)
        k = qkv[:, 1 * HIDDEN:2 * HIDDEN].reshape(batch, seq, HIDDEN)
        v = qkv[:, 2 * HIDDEN:3 * HIDDEN].reshape(batch, seq, HIDDEN)

        # Attention: all batches at once per head (batched einsum, no grid steps).
        head_ctx = []
        for hd in range(N_HEADS):
            sl = slice(hd * HEAD_DIM, (hd + 1) * HEAD_DIM)
            qh, kh, vh = q[:, :, sl], k[:, :, sl], v[:, :, sl]        # (B, S, dH)
            s = jnp.einsum('bqd,bkd->bqk', qh, kh,
                           preferred_element_type=jnp.float32) * ATTN_SCALE
            s = s + attn_bias
            s = s - jnp.max(s, axis=-1, keepdims=True)
            p = jnp.exp(s)
            p = p * pl.reciprocal(jnp.sum(p, axis=-1, keepdims=True), approx=True)
            head_ctx.append(jnp.einsum('bqk,bkd->bqd', p, vh,
                                       preferred_element_type=jnp.float32))
        ctx = jnp.concatenate(head_ctx, axis=-1).reshape(batch * seq, HIDDEN)

        # Output projection + residual + LN1 (fused epilogue).
        attn_out = jnp.dot(ctx, wo_ref[l], preferred_element_type=jnp.float32) + bo_ref[l]
        h1 = layer_norm(h + attn_out, ln1g_ref[l], ln1b_ref[l])

        # FFN: GELU fused into the w1 matmul epilogue; w2 + residual + LN2.
        f = jnp.dot(h1, w1_ref[l], preferred_element_type=jnp.float32) + b1_ref[l]
        # TODO(synk): HF BERT/RoBERTa default is exact erf GELU; tanh approximation used here.
        f = jax.nn.gelu(f, approximate=True)
        f = jnp.dot(f, w2_ref[l], preferred_element_type=jnp.float32) + b2_ref[l]
        h = layer_norm(h1 + f, ln2g_ref[l], ln2b_ref[l])

    # Masked mean pooling (torch.clamp(min=1e-9) semantics) + classifier.
    # nn.Dropout(p=0.2) is identity at inference time, so it is elided.
    h3 = h.reshape(batch, seq, HIDDEN)
    m3 = mask[:, :, None]                                             # (B, S, 1)
    summed = jnp.sum(h3 * m3, axis=1)                                 # (B, H)
    cnt = jnp.maximum(jnp.sum(mask, axis=1, keepdims=True), 1e-9)     # (B, 1)
    mean = summed / cnt
    o_ref[...] = (jnp.dot(mean, cls_w_ref[...], preferred_element_type=jnp.float32)
                  + cls_b_ref[...]).astype(o_ref.dtype)


# ----------------------------- parameters -----------------------------

def init_params(key):
    def nrm(k, shape, scale=0.02):
        return scale * jax.random.normal(k, shape, dtype=jnp.float32)

    ks = iter(jax.random.split(key, 8))
    return {
        "tok_emb": nrm(next(ks), (VOCAB, HIDDEN)),
        "pos_emb": nrm(next(ks), (MAX_SEQ, HIDDEN)),
        "emb_ln_g": jnp.ones((1, HIDDEN), jnp.float32),
        "emb_ln_b": jnp.zeros((1, HIDDEN), jnp.float32),
        "cls_w": nrm(next(ks), (HIDDEN, N_CLASSES)),
        "cls_b": jnp.zeros((1, N_CLASSES), jnp.float32),
        # Per-layer weights stacked on a leading layer axis; q/k/v concatenated
        # into a single (H, 3H) weight so one matmul does all three projections.
        "wqkv": nrm(next(ks), (N_LAYERS, HIDDEN, 3 * HIDDEN)),
        "bqkv": jnp.zeros((N_LAYERS, 1, 3 * HIDDEN), jnp.float32),
        "wo": nrm(next(ks), (N_LAYERS, HIDDEN, HIDDEN)),
        "bo": jnp.zeros((N_LAYERS, 1, HIDDEN), jnp.float32),
        "ln1_g": jnp.ones((N_LAYERS, 1, HIDDEN), jnp.float32),
        "ln1_b": jnp.zeros((N_LAYERS, 1, HIDDEN), jnp.float32),
        "w1": nrm(next(ks), (N_LAYERS, HIDDEN, FFN)),
        "b1": jnp.zeros((N_LAYERS, 1, FFN), jnp.float32),
        "w2": nrm(next(ks), (N_LAYERS, FFN, HIDDEN)),
        "b2": jnp.zeros((N_LAYERS, 1, HIDDEN), jnp.float32),
        "ln2_g": jnp.ones((N_LAYERS, 1, HIDDEN), jnp.float32),
        "ln2_b": jnp.zeros((N_LAYERS, 1, HIDDEN), jnp.float32),
    }


# ----------------------------- forward pass -----------------------------

def custom_bert_mean_forward(params, input_ids, attention_mask):
    B, S = input_ids.shape
    amask_f = attention_mask.astype(jnp.float32)

    # Embedding gather + positional add stay in plain JAX (glue); everything else
    # runs inside the single fused Pallas kernel below.
    h0 = (params["tok_emb"][input_ids] + params["pos_emb"][None, :S, :]).reshape(B * S, HIDDEN)

    kernel = functools.partial(_fused_bert_mean_kernel, batch=B, seq=S)
    logits = pl.pallas_call(
        kernel,
        out_shape=jax.ShapeDtypeStruct((B, N_CLASSES), jnp.float32),
    )(
        h0, amask_f,
        params["emb_ln_g"], params["emb_ln_b"],
        params["wqkv"], params["bqkv"], params["wo"], params["bo"],
        params["ln1_g"], params["ln1_b"],
        params["w1"], params["b1"], params["w2"], params["b2"],
        params["ln2_g"], params["ln2_b"],
        params["cls_w"], params["cls_b"],
    )
    return logits  # SequenceClassifierOutput.logits; labels=None -> no loss


if __name__ == "__main__":
    key = jax.random.PRNGKey(0)
    pkey, ikey = jax.random.split(key)
    params = init_params(pkey)

    B, S = 2, 8
    input_ids = jax.random.randint(ikey, (B, S), 0, VOCAB)
    attention_mask = jnp.array(
        [[1, 1, 1, 1, 1, 1, 0, 0],
         [1, 1, 1, 1, 0, 0, 0, 0]], dtype=jnp.int32)

    logits = jax.jit(custom_bert_mean_forward)(params, input_ids, attention_mask)
    jax.block_until_ready(logits)
    assert logits.shape == (B, N_CLASSES)
    assert bool(jnp.all(jnp.isfinite(logits)))
    print("KERNEL_OK")
</pallas_src>

<mosaic_0001>
module attributes {stable_mosaic.version = 11 : i64} {
  func.func @_fused_bert_mean_kernel(%arg0: memref<16x32xf32, #tpu.memory_space<vmem>>, %arg1: memref<2x8xf32, #tpu.memory_space<vmem>>, %arg2: memref<1x32xf32, #tpu.memory_space<vmem>>, %arg3: memref<1x32xf32, #tpu.memory_space<vmem>>, %arg4: memref<2x32x96xf32, #tpu.memory_space<vmem>>, %arg5: memref<2x1x96xf32, #tpu.memory_space<vmem>>, %arg6: memref<2x32x32xf32, #tpu.memory_space<vmem>>, %arg7: memref<2x1x32xf32, #tpu.memory_space<vmem>>, %arg8: memref<2x1x32xf32, #tpu.memory_space<vmem>>, %arg9: memref<2x1x32xf32, #tpu.memory_space<vmem>>, %arg10: memref<2x32x64xf32, #tpu.memory_space<vmem>>, %arg11: memref<2x1x64xf32, #tpu.memory_space<vmem>>, %arg12: memref<2x64x32xf32, #tpu.memory_space<vmem>>, %arg13: memref<2x1x32xf32, #tpu.memory_space<vmem>>, %arg14: memref<2x1x32xf32, #tpu.memory_space<vmem>>, %arg15: memref<2x1x32xf32, #tpu.memory_space<vmem>>, %arg16: memref<32x36xf32, #tpu.memory_space<vmem>>, %arg17: memref<1x36xf32, #tpu.memory_space<vmem>>, %arg18: memref<2x36xf32, #tpu.memory_space<vmem>>) attributes {dimension_semantics = [], scalar_prefetch = 0 : i64, scratch_operands = 0 : i64, tpu.core_type = #tpu.core_type<tc>} {
    %c0 = arith.constant 0 : index
    %c0_0 = arith.constant 0 : index
    %0 = vector.load %arg1[%c0, %c0_0] : memref<2x8xf32, #tpu.memory_space<vmem>>, vector<2x8xf32>
    %cst = arith.constant 1.000000e+00 : f32
    %1 = vector.broadcast %cst : f32 to vector<2x8xf32>
    %2 = arith.subf %0, %1 : vector<2x8xf32>
    %cst_1 = arith.constant 1.000000e+09 : f32
    %3 = vector.broadcast %cst_1 : f32 to vector<2x8xf32>
    %4 = arith.mulf %2, %3 : vector<2x8xf32>
    %5 = vector.shape_cast %4 : vector<2x8xf32> to vector<2x1x8xf32>
    %c0_2 = arith.constant 0 : index
    %c0_3 = arith.constant 0 : index
    %6 = vector.load %arg0[%c0_2, %c0_3] : memref<16x32xf32, #tpu.memory_space<vmem>>, vector<16x32xf32>
    %c0_4 = arith.constant 0 : index
    %c0_5 = arith.constant 0 : index
    %7 = vector.load %arg2[%c0_4, %c0_5] : memref<1x32xf32, #tpu.memory_space<vmem>>, vector<1x32xf32>
    %c0_6 = arith.constant 0 : index
    %c0_7 = arith.constant 0 : index
    %8 = vector.load %arg3[%c0_6, %c0_7] : memref<1x32xf32, #tpu.memory_space<vmem>>, vector<1x32xf32>
    %cst_8 = arith.constant dense<0.000000e+00> : vector<16xf32>
    %9 = vector.multi_reduction <add>, %6, %cst_8 [1] : vector<16x32xf32> to vector<16xf32>
    %10 = vector.shape_cast %9 : vector<16xf32> to vector<16x1xf32>
    %cst_9 = arith.constant 3.200000e+01 : f32
    %11 = vector.broadcast %cst_9 : f32 to vector<16x1xf32>
    %12 = arith.divf %10, %11 : vector<16x1xf32>
    %13 = vector.broadcast %12 : vector<16x1xf32> to vector<16x32xf32>
    %14 = arith.subf %6, %13 : vector<16x32xf32>
    %15 = arith.mulf %14, %14 : vector<16x32xf32>
    %cst_10 = arith.constant dense<0.000000e+00> : vector<16xf32>
    %16 = vector.multi_reduction <add>, %15, %cst_10 [1] : vector<16x32xf32> to vector<16xf32>
    %17 = vector.shape_cast %16 : vector<16xf32> to vector<16x1xf32>
    %cst_11 = arith.constant 3.200000e+01 : f32
    %18 = vector.broadcast %cst_11 : f32 to vector<16x1xf32>
    %19 = arith.divf %17, %18 : vector<16x1xf32>
    %20 = vector.broadcast %12 : vector<16x1xf32> to vector<16x32xf32>
    %21 = arith.subf %6, %20 : vector<16x32xf32>
    %cst_12 = arith.constant 9.99999996E-13 : f32
    %22 = vector.broadcast %cst_12 : f32 to vector<16x1xf32>
    %23 = arith.addf %19, %22 : vector<16x1xf32>
    %24 = math.rsqrt %23 : vector<16x1xf32>
    %25 = vector.broadcast %24 : vector<16x1xf32> to vector<16x32xf32>
    %26 = arith.mulf %21, %25 : vector<16x32xf32>
    %27 = vector.broadcast %7 : vector<1x32xf32> to vector<16x32xf32>
    %28 = arith.mulf %26, %27 : vector<16x32xf32>
    %29 = vector.broadcast %8 : vector<1x32xf32> to vector<16x32xf32>
    %30 = arith.addf %28, %29 : vector<16x32xf32>
    %c0_13 = arith.constant 0 : index
    %c0_14 = arith.constant 0 : index
    %c0_15 = arith.constant 0 : index
    %31 = vector.load %arg4[%c0_13, %c0_14, %c0_15] : memref<2x32x96xf32, #tpu.memory_space<vmem>>, vector<1x32x96xf32>
    %32 = vector.shape_cast %31 : vector<1x32x96xf32> to vector<32x96xf32>
    %cst_16 = arith.constant dense<0.000000e+00> : vector<16x96xf32>
    %33 = tpu.matmul %30, %32, %cst_16 {dimension_numbers = #tpu.dot_dimension_numbers<[1], [0], [0], [1], [0, 0, 1, 1], [], []>} : vector<16x32xf32>, vector<32x96xf32>, vector<16x96xf32> -> vector<16x96xf32>
    %c0_17 = arith.constant 0 : index
    %c0_18 = arith.constant 0 : index
    %c0_19 = arith.constant 0 : index
    %34 = vector.load %arg5[%c0_17, %c0_18, %c0_19] : memref<2x1x96xf32, #tpu.memory_space<vmem>>, vector<1x1x96xf32>
    %35 = vector.shape_cast %34 : vector<1x1x96xf32> to vector<1x96xf32>
    %36 = vector.broadcast %35 : vector<1x96xf32> to vector<16x96xf32>
    %37 = arith.addf %33, %36 : vector<16x96xf32>
    %38 = vector.extract_strided_slice %37 {offsets = [0, 0], sizes = [16, 32], strides = [1, 1]} : vector<16x96xf32> to vector<16x32xf32>
    %39 = vector.shape_cast %38 : vector<16x32xf32> to vector<2x8x32xf32>
    %40 = vector.extract_strided_slice %37 {offsets = [0, 32], sizes = [16, 32], strides = [1, 1]} : vector<16x96xf32> to vector<16x32xf32>
    %41 = vector.shape_cast %40 : vector<16x32xf32> to vector<2x8x32xf32>
    %42 = vector.extract_strided_slice %37 {offsets = [0, 64], sizes = [16, 32], strides = [1, 1]} : vector<16x96xf32> to vector<16x32xf32>
    %43 = vector.shape_cast %42 : vector<16x32xf32> to vector<2x8x32xf32>
    %44 = vector.extract_strided_slice %39 {offsets = [0, 0, 0], sizes = [2, 8, 16], strides = [1, 1, 1]} : vector<2x8x32xf32> to vector<2x8x16xf32>
    %45 = vector.extract_strided_slice %41 {offsets = [0, 0, 0], sizes = [2, 8, 16], strides = [1, 1, 1]} : vector<2x8x32xf32> to vector<2x8x16xf32>
    %46 = vector.extract_strided_slice %43 {offsets = [0, 0, 0], sizes = [2, 8, 16], strides = [1, 1, 1]} : vector<2x8x32xf32> to vector<2x8x16xf32>
    "tpu.trace_start"() <{level = 10 : i32, message = "bqd,bkd->bqk"}> : () -> ()
    %cst_20 = arith.constant dense<0.000000e+00> : vector<2x8x8xf32>
    %47 = tpu.matmul %44, %45, %cst_20 {dimension_numbers = #tpu.dot_dimension_numbers<[2], [2], [1], [1], [0, 0, 0, 1, 1, 1], [0], [0]>} : vector<2x8x16xf32>, vector<2x8x16xf32>, vector<2x8x8xf32> -> vector<2x8x8xf32>
    "tpu.trace_stop"() : () -> ()
    %cst_21 = arith.constant 2.500000e-01 : f32
    %48 = vector.broadcast %cst_21 : f32 to vector<2x8x8xf32>
    %49 = arith.mulf %47, %48 : vector<2x8x8xf32>
    %50 = vector.broadcast %5 : vector<2x1x8xf32> to vector<2x8x8xf32>
    %51 = arith.addf %49, %50 : vector<2x8x8xf32>
    %cst_22 = arith.constant dense<0xFF800000> : vector<2x8xf32>
    %52 = vector.multi_reduction <maximumf>, %51, %cst_22 [2] : vector<2x8x8xf32> to vector<2x8xf32>
    %53 = vector.shape_cast %52 : vector<2x8xf32> to vector<2x8x1xf32>
    %54 = vector.broadcast %53 : vector<2x8x1xf32> to vector<2x8x8xf32>
    %55 = arith.subf %51, %54 : vector<2x8x8xf32>
    %56 = math.exp %55 : vector<2x8x8xf32>
    %cst_23 = arith.constant dense<0.000000e+00> : vector<2x8xf32>
    %57 = vector.multi_reduction <add>, %56, %cst_23 [2] : vector<2x8x8xf32> to vector<2x8xf32>
    %58 = vector.shape_cast %57 : vector<2x8xf32> to vector<2x8x1xf32>
    %59 = tpu.reciprocal %58 {approx = true} : vector<2x8x1xf32> -> vector<2x8x1xf32>
    %60 = vector.broadcast %59 : vector<2x8x1xf32> to vector<2x8x8xf32>
    %61 = arith.mulf %56, %60 : vector<2x8x8xf32>
    "tpu.trace_start"() <{level = 10 : i32, message = "bqk,bkd->bqd"}> : () -> ()
    %cst_24 = arith.constant dense<0.000000e+00> : vector<2x8x16xf32>
    %62 = tpu.matmul %61, %46, %cst_24 {dimension_numbers = #tpu.dot_dimension_numbers<[2], [1], [1], [2], [0, 0, 0, 1, 1, 2], [0], [0]>} : vector<2x8x8xf32>, vector<2x8x16xf32>, vector<2x8x16xf32> -> vector<2x8x16xf32>
    "tpu.trace_stop"() : () -> ()
    %63 = vector.extract_strided_slice %39 {offsets = [0, 0, 16], sizes = [2, 8, 16], strides = [1, 1, 1]} : vector<2x8x32xf32> to vector<2x8x16xf32>
    %64 = vector.extract_strided_slice %41 {offsets = [0, 0, 16], sizes = [2, 8, 16], strides = [1, 1, 1]} : vector<2x8x32xf32> to vector<2x8x16xf32>
    %65 = vector.extract_strided_slice %43 {offsets = [0, 0, 16], sizes = [2, 8, 16], strides = [1, 1, 1]} : vector<2x8x32xf32> to vector<2x8x16xf32>
    "tpu.trace_start"() <{level = 10 : i32, message = "bqd,bkd->bqk"}> : () -> ()
    %cst_25 = arith.constant dense<0.000000e+00> : vector<2x8x8xf32>
    %66 = tpu.matmul %63, %64, %cst_25 {dimension_numbers = #tpu.dot_dimension_numbers<[2], [2], [1], [1], [0, 0, 0, 1, 1, 1], [0], [0]>} : vector<2x8x16xf32>, vector<2x8x16xf32>, vector<2x8x8xf32> -> vector<2x8x8xf32>
    "tpu.trace_stop"() : () -> ()
    %cst_26 = arith.constant 2.500000e-01 : f32
    %67 = vector.broadcast %cst_26 : f32 to vector<2x8x8xf32>
    %68 = arith.mulf %66, %67 : vector<2x8x8xf32>
    %69 = vector.broadcast %5 : vector<2x1x8xf32> to vector<2x8x8xf32>
    %70 = arith.addf %68, %69 : vector<2x8x8xf32>
    %cst_27 = arith.constant dense<0xFF800000> : vector<2x8xf32>
    %71 = vector.multi_reduction <maximumf>, %70, %cst_27 [2] : vector<2x8x8xf32> to vector<2x8xf32>
    %72 = vector.shape_cast %71 : vector<2x8xf32> to vector<2x8x1xf32>
    %73 = vector.broadcast %72 : vector<2x8x1xf32> to vector<2x8x8xf32>
    %74 = arith.subf %70, %73 : vector<2x8x8xf32>
    %75 = math.exp %74 : vector<2x8x8xf32>
    %cst_28 = arith.constant dense<0.000000e+00> : vector<2x8xf32>
    %76 = vector.multi_reduction <add>, %75, %cst_28 [2] : vector<2x8x8xf32> to vector<2x8xf32>
    %77 = vector.shape_cast %76 : vector<2x8xf32> to vector<2x8x1xf32>
    %78 = tpu.reciprocal %77 {approx = true} : vector<2x8x1xf32> -> vector<2x8x1xf32>
    %79 = vector.broadcast %78 : vector<2x8x1xf32> to vector<2x8x8xf32>
    %80 = arith.mulf %75, %79 : vector<2x8x8xf32>
    "tpu.trace_start"() <{level = 10 : i32, message = "bqk,bkd->bqd"}> : () -> ()
    %cst_29 = arith.constant dense<0.000000e+00> : vector<2x8x16xf32>
    %81 = tpu.matmul %80, %65, %cst_29 {dimension_numbers = #tpu.dot_dimension_numbers<[2], [1], [1], [2], [0, 0, 0, 1, 1, 2], [0], [0]>} : vector<2x8x8xf32>, vector<2x8x16xf32>, vector<2x8x16xf32> -> vector<2x8x16xf32>
    "tpu.trace_stop"() : () -> ()
    %82 = tpu.concatenate %62, %81 in 2 : vector<2x8x16xf32>, vector<2x8x16xf32> -> vector<2x8x32xf32>
    %83 = vector.shape_cast %82 : vector<2x8x32xf32> to vector<16x32xf32>
    %c0_30 = arith.constant 0 : index
    %c0_31 = arith.constant 0 : index
    %c0_32 = arith.constant 0 : index
    %84 = vector.load %arg6[%c0_30, %c0_31, %c0_32] : memref<2x32x32xf32, #tpu.memory_space<vmem>>, vector<1x32x32xf32>
    %85 = vector.shape_cast %84 : vector<1x32x32xf32> to vector<32x32xf32>
    %cst_33 = arith.constant dense<0.000000e+00> : vector<16x32xf32>
    %86 = tpu.matmul %83, %85, %cst_33 {dimension_numbers = #tpu.dot_dimension_numbers<[1], [0], [0], [1], [0, 0, 1, 1], [], []>} : vector<16x32xf32>, vector<32x32xf32>, vector<16x32xf32> -> vector<16x32xf32>
    %c0_34 = arith.constant 0 : index
    %c0_35 = arith.constant 0 : index
    %c0_36 = arith.constant 0 : index
    %87 = vector.load %arg7[%c0_34, %c0_35, %c0_36] : memref<2x1x32xf32, #tpu.memory_space<vmem>>, vector<1x1x32xf32>
    %88 = vector.shape_cast %87 : vector<1x1x32xf32> to vector<1x32xf32>
    %89 = vector.broadcast %88 : vector<1x32xf32> to vector<16x32xf32>
    %90 = arith.addf %86, %89 : vector<16x32xf32>
    %91 = arith.addf %30, %90 : vector<16x32xf32>
    %c0_37 = arith.constant 0 : index
    %c0_38 = arith.constant 0 : index
    %c0_39 = arith.constant 0 : index
    %92 = vector.load %arg8[%c0_37, %c0_38, %c0_39] : memref<2x1x32xf32, #tpu.memory_space<vmem>>, vector<1x1x32xf32>
    %93 = vector.shape_cast %92 : vector<1x1x32xf32> to vector<1x32xf32>
    %c0_40 = arith.constant 0 : index
    %c0_41 = arith.constant 0 : index
    %c0_42 = arith.constant 0 : index
    %94 = vector.load %arg9[%c0_40, %c0_41, %c0_42] : memref<2x1x32xf32, #tpu.memory_space<vmem>>, vector<1x1x32xf32>
    %95 = vector.shape_cast %94 : vector<1x1x32xf32> to vector<1x32xf32>
    %cst_43 = arith.constant dense<0.000000e+00> : vector<16xf32>
    %96 = vector.multi_reduction <add>, %91, %cst_43 [1] : vector<16x32xf32> to vector<16xf32>
    %97 = vector.shape_cast %96 : vector<16xf32> to vector<16x1xf32>
    %cst_44 = arith.constant 3.200000e+01 : f32
    %98 = vector.broadcast %cst_44 : f32 to vector<16x1xf32>
    %99 = arith.divf %97, %98 : vector<16x1xf32>
    %100 = vector.broadcast %99 : vector<16x1xf32> to vector<16x32xf32>
    %101 = arith.subf %91, %100 : vector<16x32xf32>
    %102 = arith.mulf %101, %101 : vector<16x32xf32>
    %cst_45 = arith.constant dense<0.000000e+00> : vector<16xf32>
    %103 = vector.multi_reduction <add>, %102, %cst_45 [1] : vector<16x32xf32> to vector<16xf32>
    %104 = vector.shape_cast %103 : vector<16xf32> to vector<16x1xf32>
    %cst_46 = arith.constant 3.200000e+01 : f32
    %105 = vector.broadcast %cst_46 : f32 to vector<16x1xf32>
    %106 = arith.divf %104, %105 : vector<16x1xf32>
    %107 = vector.broadcast %99 : vector<16x1xf32> to vector<16x32xf32>
    %108 = arith.subf %91, %107 : vector<16x32xf32>
    %cst_47 = arith.constant 9.99999996E-13 : f32
    %109 = vector.broadcast %cst_47 : f32 to vector<16x1xf32>
    %110 = arith.addf %106, %109 : vector<16x1xf32>
    %111 = math.rsqrt %110 : vector<16x1xf32>
    %112 = vector.broadcast %111 : vector<16x1xf32> to vector<16x32xf32>
    %113 = arith.mulf %108, %112 : vector<16x32xf32>
    %114 = vector.broadcast %93 : vector<1x32xf32> to vector<16x32xf32>
    %115 = arith.mulf %113, %114 : vector<16x32xf32>
    %116 = vector.broadcast %95 : vector<1x32xf32> to vector<16x32xf32>
    %117 = arith.addf %115, %116 : vector<16x32xf32>
    %c0_48 = arith.constant 0 : index
    %c0_49 = arith.constant 0 : index
    %c0_50 = arith.constant 0 : index
    %118 = vector.load %arg10[%c0_48, %c0_49, %c0_50] : memref<2x32x64xf32, #tpu.memory_space<vmem>>, vector<1x32x64xf32>
    %119 = vector.shape_cast %118 : vector<1x32x64xf32> to vector<32x64xf32>
    %cst_51 = arith.constant dense<0.000000e+00> : vector<16x64xf32>
    %120 = tpu.matmul %117, %119, %cst_51 {dimension_numbers = #tpu.dot_dimension_numbers<[1], [0], [0], [1], [0, 0, 1, 1], [], []>} : vector<16x32xf32>, vector<32x64xf32>, vector<16x64xf32> -> vector<16x64xf32>
    %c0_52 = arith.constant 0 : index
    %c0_53 = arith.constant 0 : index
    %c0_54 = arith.constant 0 : index
    %121 = vector.load %arg11[%c0_52, %c0_53, %c0_54] : memref<2x1x64xf32, #tpu.memory_space<vmem>>, vector<1x1x64xf32>
    %122 = vector.shape_cast %121 : vector<1x1x64xf32> to vector<1x64xf32>
    %123 = vector.broadcast %122 : vector<1x64xf32> to vector<16x64xf32>
    %124 = arith.addf %120, %123 : vector<16x64xf32>
    %125 = arith.mulf %124, %124 : vector<16x64xf32>
    %126 = arith.mulf %124, %125 : vector<16x64xf32>
    %cst_55 = arith.constant 4.471500e-02 : f32
    %127 = vector.broadcast %cst_55 : f32 to vector<16x64xf32>
    %128 = arith.mulf %127, %126 : vector<16x64xf32>
    %129 = arith.addf %124, %128 : vector<16x64xf32>
    %cst_56 = arith.constant 0.797884583 : f32
    %130 = vector.broadcast %cst_56 : f32 to vector<16x64xf32>
    %131 = arith.mulf %130, %129 : vector<16x64xf32>
    %132 = math.tanh %131 : vector<16x64xf32>
    %cst_57 = arith.constant 1.000000e+00 : f32
    %133 = vector.broadcast %cst_57 : f32 to vector<16x64xf32>
    %134 = arith.addf %133, %132 : vector<16x64xf32>
    %cst_58 = arith.constant 5.000000e-01 : f32
    %135 = vector.broadcast %cst_58 : f32 to vector<16x64xf32>
    %136 = arith.mulf %135, %134 : vector<16x64xf32>
    %137 = arith.mulf %124, %136 : vector<16x64xf32>
    %c0_59 = arith.constant 0 : index
    %c0_60 = arith.constant 0 : index
    %c0_61 = arith.constant 0 : index
    %138 = vector.load %arg12[%c0_59, %c0_60, %c0_61] : memref<2x64x32xf32, #tpu.memory_space<vmem>>, vector<1x64x32xf32>
    %139 = vector.shape_cast %138 : vector<1x64x32xf32> to vector<64x32xf32>
    %cst_62 = arith.constant dense<0.000000e+00> : vector<16x32xf32>
    %140 = tpu.matmul %137, %139, %cst_62 {dimension_numbers = #tpu.dot_dimension_numbers<[1], [0], [0], [1], [0, 0, 1, 1], [], []>} : vector<16x64xf32>, vector<64x32xf32>, vector<16x32xf32> -> vector<16x32xf32>
    %c0_63 = arith.constant 0 : index
    %c0_64 = arith.constant 0 : index
    %c0_65 = arith.constant 0 : index
    %141 = vector.load %arg13[%c0_63, %c0_64, %c0_65] : memref<2x1x32xf32, #tpu.memory_space<vmem>>, vector<1x1x32xf32>
    %142 = vector.shape_cast %141 : vector<1x1x32xf32> to vector<1x32xf32>
    %143 = vector.broadcast %142 : vector<1x32xf32> to vector<16x32xf32>
    %144 = arith.addf %140, %143 : vector<16x32xf32>
    %145 = arith.addf %117, %144 : vector<16x32xf32>
    %c0_66 = arith.constant 0 : index
    %c0_67 = arith.constant 0 : index
    %c0_68 = arith.constant 0 : index
    %146 = vector.load %arg14[%c0_66, %c0_67, %c0_68] : memref<2x1x32xf32, #tpu.memory_space<vmem>>, vector<1x1x32xf32>
    %147 = vector.shape_cast %146 : vector<1x1x32xf32> to vector<1x32xf32>
    %c0_69 = arith.constant 0 : index
    %c0_70 = arith.constant 0 : index
    %c0_71 = arith.constant 0 : index
    %148 = vector.load %arg15[%c0_69, %c0_70, %c0_71] : memref<2x1x32xf32, #tpu.memory_space<vmem>>, vector<1x1x32xf32>
    %149 = vector.shape_cast %148 : vector<1x1x32xf32> to vector<1x32xf32>
    %cst_72 = arith.constant dense<0.000000e+00> : vector<16xf32>
    %150 = vector.multi_reduction <add>, %145, %cst_72 [1] : vector<16x32xf32> to vector<16xf32>
    %151 = vector.shape_cast %150 : vector<16xf32> to vector<16x1xf32>
    %cst_73 = arith.constant 3.200000e+01 : f32
    %152 = vector.broadcast %cst_73 : f32 to vector<16x1xf32>
    %153 = arith.divf %151, %152 : vector<16x1xf32>
    %154 = vector.broadcast %153 : vector<16x1xf32> to vector<16x32xf32>
    %155 = arith.subf %145, %154 : vector<16x32xf32>
    %156 = arith.mulf %155, %155 : vector<16x32xf32>
    %cst_74 = arith.constant dense<0.000000e+00> : vector<16xf32>
    %157 = vector.multi_reduction <add>, %156, %cst_74 [1] : vector<16x32xf32> to vector<16xf32>
    %158 = vector.shape_cast %157 : vector<16xf32> to vector<16x1xf32>
    %cst_75 = arith.constant 3.200000e+01 : f32
    %159 = vector.broadcast %cst_75 : f32 to vector<16x1xf32>
    %160 = arith.divf %158, %159 : vector<16x1xf32>
    %161 = vector.broadcast %153 : vector<16x1xf32> to vector<16x32xf32>
    %162 = arith.subf %145, %161 : vector<16x32xf32>
    %cst_76 = arith.constant 9.99999996E-13 : f32
    %163 = vector.broadcast %cst_76 : f32 to vector<16x1xf32>
    %164 = arith.addf %160, %163 : vector<16x1xf32>
    %165 = math.rsqrt %164 : vector<16x1xf32>
    %166 = vector.broadcast %165 : vector<16x1xf32> to vector<16x32xf32>
    %167 = arith.mulf %162, %166 : vector<16x32xf32>
    %168 = vector.broadcast %147 : vector<1x32xf32> to vector<16x32xf32>
    %169 = arith.mulf %167, %168 : vector<16x32xf32>
    %170 = vector.broadcast %149 : vector<1x32xf32> to vector<16x32xf32>
    %171 = arith.addf %169, %170 : vector<16x32xf32>
    %c1 = arith.constant 1 : index
    %c0_77 = arith.constant 0 : index
    %c0_78 = arith.constant 0 : index
    %172 = vector.load %arg4[%c1, %c0_77, %c0_78] : memref<2x32x96xf32, #tpu.memory_space<vmem>>, vector<1x32x96xf32>
    %173 = vector.shape_cast %172 : vector<1x32x96xf32> to vector<32x96xf32>
    %cst_79 = arith.constant dense<0.000000e+00> : vector<16x96xf32>
    %174 = tpu.matmul %171, %173, %cst_79 {dimension_numbers = #tpu.dot_dimension_numbers<[1], [0], [0], [1], [0, 0, 1, 1], [], []>} : vector<16x32xf32>, vector<32x96xf32>, vector<16x96xf32> -> vector<16x96xf32>
    %c1_80 = arith.constant 1 : index
    %c0_81 = arith.constant 0 : index
    %c0_82 = arith.constant 0 : index
    %175 = vector.load %arg5[%c1_80, %c0_81, %c0_82] : memref<2x1x96xf32, #tpu.memory_space<vmem>>, vector<1x1x96xf32>
    %176 = vector.shape_cast %175 : vector<1x1x96xf32> to vector<1x96xf32>
    %177 = vector.broadcast %176 : vector<1x96xf32> to vector<16x96xf32>
    %178 = arith.addf %174, %177 : vector<16x96xf32>
    %179 = vector.extract_strided_slice %178 {offsets = [0, 0], sizes = [16, 32], strides = [1, 1]} : vector<16x96xf32> to vector<16x32xf32>
    %180 = vector.shape_cast %179 : vector<16x32xf32> to vector<2x8x32xf32>
    %181 = vector.extract_strided_slice %178 {offsets = [0, 32], sizes = [16, 32], strides = [1, 1]} : vector<16x96xf32> to vector<16x32xf32>
    %182 = vector.shape_cast %181 : vector<16x32xf32> to vector<2x8x32xf32>
    %183 = vector.extract_strided_slice %178 {offsets = [0, 64], sizes = [16, 32], strides = [1, 1]} : vector<16x96xf32> to vector<16x32xf32>
    %184 = vector.shape_cast %183 : vector<16x32xf32> to vector<2x8x32xf32>
    %185 = vector.extract_strided_slice %180 {offsets = [0, 0, 0], sizes = [2, 8, 16], strides = [1, 1, 1]} : vector<2x8x32xf32> to vector<2x8x16xf32>
    %186 = vector.extract_strided_slice %182 {offsets = [0, 0, 0], sizes = [2, 8, 16], strides = [1, 1, 1]} : vector<2x8x32xf32> to vector<2x8x16xf32>
    %187 = vector.extract_strided_slice %184 {offsets = [0, 0, 0], sizes = [2, 8, 16], strides = [1, 1, 1]} : vector<2x8x32xf32> to vector<2x8x16xf32>
    "tpu.trace_start"() <{level = 10 : i32, message = "bqd,bkd->bqk"}> : () -> ()
    %cst_83 = arith.constant dense<0.000000e+00> : vector<2x8x8xf32>
    %188 = tpu.matmul %185, %186, %cst_83 {dimension_numbers = #tpu.dot_dimension_numbers<[2], [2], [1], [1], [0, 0, 0, 1, 1, 1], [0], [0]>} : vector<2x8x16xf32>, vector<2x8x16xf32>, vector<2x8x8xf32> -> vector<2x8x8xf32>
    "tpu.trace_stop"() : () -> ()
    %cst_84 = arith.constant 2.500000e-01 : f32
    %189 = vector.broadcast %cst_84 : f32 to vector<2x8x8xf32>
    %190 = arith.mulf %188, %189 : vector<2x8x8xf32>
    %191 = vector.broadcast %5 : vector<2x1x8xf32> to vector<2x8x8xf32>
    %192 = arith.addf %190, %191 : vector<2x8x8xf32>
    %cst_85 = arith.constant dense<0xFF800000> : vector<2x8xf32>
    %193 = vector.multi_reduction <maximumf>, %192, %cst_85 [2] : vector<2x8x8xf32> to vector<2x8xf32>
    %194 = vector.shape_cast %193 : vector<2x8xf32> to vector<2x8x1xf32>
    %195 = vector.broadcast %194 : vector<2x8x1xf32> to vector<2x8x8xf32>
    %196 = arith.subf %192, %195 : vector<2x8x8xf32>
    %197 = math.exp %196 : vector<2x8x8xf32>
    %cst_86 = arith.constant dense<0.000000e+00> : vector<2x8xf32>
    %198 = vector.multi_reduction <add>, %197, %cst_86 [2] : vector<2x8x8xf32> to vector<2x8xf32>
    %199 = vector.shape_cast %198 : vector<2x8xf32> to vector<2x8x1xf32>
    %200 = tpu.reciprocal %199 {approx = true} : vector<2x8x1xf32> -> vector<2x8x1xf32>
    %201 = vector.broadcast %200 : vector<2x8x1xf32> to vector<2x8x8xf32>
    %202 = arith.mulf %197, %201 : vector<2x8x8xf32>
    "tpu.trace_start"() <{level = 10 : i32, message = "bqk,bkd->bqd"}> : () -> ()
    %cst_87 = arith.constant dense<0.000000e+00> : vector<2x8x16xf32>
    %203 = tpu.matmul %202, %187, %cst_87 {dimension_numbers = #tpu.dot_dimension_numbers<[2], [1], [1], [2], [0, 0, 0, 1, 1, 2], [0], [0]>} : vector<2x8x8xf32>, vector<2x8x16xf32>, vector<2x8x16xf32> -> vector<2x8x16xf32>
    "tpu.trace_stop"() : () -> ()
    %204 = vector.extract_strided_slice %180 {offsets = [0, 0, 16], sizes = [2, 8, 16], strides = [1, 1, 1]} : vector<2x8x32xf32> to vector<2x8x16xf32>
    %205 = vector.extract_strided_slice %182 {offsets = [0, 0, 16], sizes = [2, 8, 16], strides = [1, 1, 1]} : vector<2x8x32xf32> to vector<2x8x16xf32>
    %206 = vector.extract_strided_slice %184 {offsets = [0, 0, 16], sizes = [2, 8, 16], strides = [1, 1, 1]} : vector<2x8x32xf32> to vector<2x8x16xf32>
    "tpu.trace_start"() <{level = 10 : i32, message = "bqd,bkd->bqk"}> : () -> ()
    %cst_88 = arith.constant dense<0.000000e+00> : vector<2x8x8xf32>
    %207 = tpu.matmul %204, %205, %cst_88 {dimension_numbers = #tpu.dot_dimension_numbers<[2], [2], [1], [1], [0, 0, 0, 1, 1, 1], [0], [0]>} : vector<2x8x16xf32>, vector<2x8x16xf32>, vector<2x8x8xf32> -> vector<2x8x8xf32>
    "tpu.trace_stop"() : () -> ()
    %cst_89 = arith.constant 2.500000e-01 : f32
    %208 = vector.broadcast %cst_89 : f32 to vector<2x8x8xf32>
    %209 = arith.mulf %207, %208 : vector<2x8x8xf32>
    %210 = vector.broadcast %5 : vector<2x1x8xf32> to vector<2x8x8xf32>
    %211 = arith.addf %209, %210 : vector<2x8x8xf32>
    %cst_90 = arith.constant dense<0xFF800000> : vector<2x8xf32>
    %212 = vector.multi_reduction <maximumf>, %211, %cst_90 [2] : vector<2x8x8xf32> to vector<2x8xf32>
    %213 = vector.shape_cast %212 : vector<2x8xf32> to vector<2x8x1xf32>
    %214 = vector.broadcast %213 : vector<2x8x1xf32> to vector<2x8x8xf32>
    %215 = arith.subf %211, %214 : vector<2x8x8xf32>
    %216 = math.exp %215 : vector<2x8x8xf32>
    %cst_91 = arith.constant dense<0.000000e+00> : vector<2x8xf32>
    %217 = vector.multi_reduction <add>, %216, %cst_91 [2] : vector<2x8x8xf32> to vector<2x8xf32>
    %218 = vector.shape_cast %217 : vector<2x8xf32> to vector<2x8x1xf32>
    %219 = tpu.reciprocal %218 {approx = true} : vector<2x8x1xf32> -> vector<2x8x1xf32>
    %220 = vector.broadcast %219 : vector<2x8x1xf32> to vector<2x8x8xf32>
    %221 = arith.mulf %216, %220 : vector<2x8x8xf32>
    "tpu.trace_start"() <{level = 10 : i32, message = "bqk,bkd->bqd"}> : () -> ()
    %cst_92 = arith.constant dense<0.000000e+00> : vector<2x8x16xf32>
    %222 = tpu.matmul %221, %206, %cst_92 {dimension_numbers = #tpu.dot_dimension_numbers<[2], [1], [1], [2], [0, 0, 0, 1, 1, 2], [0], [0]>} : vector<2x8x8xf32>, vector<2x8x16xf32>, vector<2x8x16xf32> -> vector<2x8x16xf32>
    "tpu.trace_stop"() : () -> ()
    %223 = tpu.concatenate %203, %222 in 2 : vector<2x8x16xf32>, vector<2x8x16xf32> -> vector<2x8x32xf32>
    %224 = vector.shape_cast %223 : vector<2x8x32xf32> to vector<16x32xf32>
    %c1_93 = arith.constant 1 : index
    %c0_94 = arith.constant 0 : index
    %c0_95 = arith.constant 0 : index
    %225 = vector.load %arg6[%c1_93, %c0_94, %c0_95] : memref<2x32x32xf32, #tpu.memory_space<vmem>>, vector<1x32x32xf32>
    %226 = vector.shape_cast %225 : vector<1x32x32xf32> to vector<32x32xf32>
    %cst_96 = arith.constant dense<0.000000e+00> : vector<16x32xf32>
    %227 = tpu.matmul %224, %226, %cst_96 {dimension_numbers = #tpu.dot_dimension_numbers<[1], [0], [0], [1], [0, 0, 1, 1], [], []>} : vector<16x32xf32>, vector<32x32xf32>, vector<16x32xf32> -> vector<16x32xf32>
    %c1_97 = arith.constant 1 : index
    %c0_98 = arith.constant 0 : index
    %c0_99 = arith.constant 0 : index
    %228 = vector.load %arg7[%c1_97, %c0_98, %c0_99] : memref<2x1x32xf32, #tpu.memory_space<vmem>>, vector<1x1x32xf32>
    %229 = vector.shape_cast %228 : vector<1x1x32xf32> to vector<1x32xf32>
    %230 = vector.broadcast %229 : vector<1x32xf32> to vector<16x32xf32>
    %231 = arith.addf %227, %230 : vector<16x32xf32>
    %232 = arith.addf %171, %231 : vector<16x32xf32>
    %c1_100 = arith.constant 1 : index
    %c0_101 = arith.constant 0 : index
    %c0_102 = arith.constant 0 : index
    %233 = vector.load %arg8[%c1_100, %c0_101, %c0_102] : memref<2x1x32xf32, #tpu.memory_space<vmem>>, vector<1x1x32xf32>
    %234 = vector.shape_cast %233 : vector<1x1x32xf32> to vector<1x32xf32>
    %c1_103 = arith.constant 1 : index
    %c0_104 = arith.constant 0 : index
    %c0_105 = arith.constant 0 : index
    %235 = vector.load %arg9[%c1_103, %c0_104, %c0_105] : memref<2x1x32xf32, #tpu.memory_space<vmem>>, vector<1x1x32xf32>
    %236 = vector.shape_cast %235 : vector<1x1x32xf32> to vector<1x32xf32>
    %cst_106 = arith.constant dense<0.000000e+00> : vector<16xf32>
    %237 = vector.multi_reduction <add>, %232, %cst_106 [1] : vector<16x32xf32> to vector<16xf32>
    %238 = vector.shape_cast %237 : vector<16xf32> to vector<16x1xf32>
    %cst_107 = arith.constant 3.200000e+01 : f32
    %239 = vector.broadcast %cst_107 : f32 to vector<16x1xf32>
    %240 = arith.divf %238, %239 : vector<16x1xf32>
    %241 = vector.broadcast %240 : vector<16x1xf32> to vector<16x32xf32>
    %242 = arith.subf %232, %241 : vector<16x32xf32>
    %243 = arith.mulf %242, %242 : vector<16x32xf32>
    %cst_108 = arith.constant dense<0.000000e+00> : vector<16xf32>
    %244 = vector.multi_reduction <add>, %243, %cst_108 [1] : vector<16x32xf32> to vector<16xf32>
    %245 = vector.shape_cast %244 : vector<16xf32> to vector<16x1xf32>
    %cst_109 = arith.constant 3.200000e+01 : f32
    %246 = vector.broadcast %cst_109 : f32 to vector<16x1xf32>
    %247 = arith.divf %245, %246 : vector<16x1xf32>
    %248 = vector.broadcast %240 : vector<16x1xf32> to vector<16x32xf32>
    %249 = arith.subf %232, %248 : vector<16x32xf32>
    %cst_110 = arith.constant 9.99999996E-13 : f32
    %250 = vector.broadcast %cst_110 : f32 to vector<16x1xf32>
    %251 = arith.addf %247, %250 : vector<16x1xf32>
    %252 = math.rsqrt %251 : vector<16x1xf32>
    %253 = vector.broadcast %252 : vector<16x1xf32> to vector<16x32xf32>
    %254 = arith.mulf %249, %253 : vector<16x32xf32>
    %255 = vector.broadcast %234 : vector<1x32xf32> to vector<16x32xf32>
    %256 = arith.mulf %254, %255 : vector<16x32xf32>
    %257 = vector.broadcast %236 : vector<1x32xf32> to vector<16x32xf32>
    %258 = arith.addf %256, %257 : vector<16x32xf32>
    %c1_111 = arith.constant 1 : index
    %c0_112 = arith.constant 0 : index
    %c0_113 = arith.constant 0 : index
    %259 = vector.load %arg10[%c1_111, %c0_112, %c0_113] : memref<2x32x64xf32, #tpu.memory_space<vmem>>, vector<1x32x64xf32>
    %260 = vector.shape_cast %259 : vector<1x32x64xf32> to vector<32x64xf32>
    %cst_114 = arith.constant dense<0.000000e+00> : vector<16x64xf32>
    %261 = tpu.matmul %258, %260, %cst_114 {dimension_numbers = #tpu.dot_dimension_numbers<[1], [0], [0], [1], [0, 0, 1, 1], [], []>} : vector<16x32xf32>, vector<32x64xf32>, vector<16x64xf32> -> vector<16x64xf32>
    %c1_115 = arith.constant 1 : index
    %c0_116 = arith.constant 0 : index
    %c0_117 = arith.constant 0 : index
    %262 = vector.load %arg11[%c1_115, %c0_116, %c0_117] : memref<2x1x64xf32, #tpu.memory_space<vmem>>, vector<1x1x64xf32>
    %263 = vector.shape_cast %262 : vector<1x1x64xf32> to vector<1x64xf32>
    %264 = vector.broadcast %263 : vector<1x64xf32> to vector<16x64xf32>
    %265 = arith.addf %261, %264 : vector<16x64xf32>
    %266 = arith.mulf %265, %265 : vector<16x64xf32>
    %267 = arith.mulf %265, %266 : vector<16x64xf32>
    %cst_118 = arith.constant 4.471500e-02 : f32
    %268 = vector.broadcast %cst_118 : f32 to vector<16x64xf32>
    %269 = arith.mulf %268, %267 : vector<16x64xf32>
    %270 = arith.addf %265, %269 : vector<16x64xf32>
    %cst_119 = arith.constant 0.797884583 : f32
    %271 = vector.broadcast %cst_119 : f32 to vector<16x64xf32>
    %272 = arith.mulf %271, %270 : vector<16x64xf32>
    %273 = math.tanh %272 : vector<16x64xf32>
    %cst_120 = arith.constant 1.000000e+00 : f32
    %274 = vector.broadcast %cst_120 : f32 to vector<16x64xf32>
    %275 = arith.addf %274, %273 : vector<16x64xf32>
    %cst_121 = arith.constant 5.000000e-01 : f32
    %276 = vector.broadcast %cst_121 : f32 to vector<16x64xf32>
    %277 = arith.mulf %276, %275 : vector<16x64xf32>
    %278 = arith.mulf %265, %277 : vector<16x64xf32>
    %c1_122 = arith.constant 1 : index
    %c0_123 = arith.constant 0 : index
    %c0_124 = arith.constant 0 : index
    %279 = vector.load %arg12[%c1_122, %c0_123, %c0_124] : memref<2x64x32xf32, #tpu.memory_space<vmem>>, vector<1x64x32xf32>
    %280 = vector.shape_cast %279 : vector<1x64x32xf32> to vector<64x32xf32>
    %cst_125 = arith.constant dense<0.000000e+00> : vector<16x32xf32>
    %281 = tpu.matmul %278, %280, %cst_125 {dimension_numbers = #tpu.dot_dimension_numbers<[1], [0], [0], [1], [0, 0, 1, 1], [], []>} : vector<16x64xf32>, vector<64x32xf32>, vector<16x32xf32> -> vector<16x32xf32>
    %c1_126 = arith.constant 1 : index
    %c0_127 = arith.constant 0 : index
    %c0_128 = arith.constant 0 : index
    %282 = vector.load %arg13[%c1_126, %c0_127, %c0_128] : memref<2x1x32xf32, #tpu.memory_space<vmem>>, vector<1x1x32xf32>
    %283 = vector.shape_cast %282 : vector<1x1x32xf32> to vector<1x32xf32>
    %284 = vector.broadcast %283 : vector<1x32xf32> to vector<16x32xf32>
    %285 = arith.addf %281, %284 : vector<16x32xf32>
    %286 = arith.addf %258, %285 : vector<16x32xf32>
    %c1_129 = arith.constant 1 : index
    %c0_130 = arith.constant 0 : index
    %c0_131 = arith.constant 0 : index
    %287 = vector.load %arg14[%c1_129, %c0_130, %c0_131] : memref<2x1x32xf32, #tpu.memory_space<vmem>>, vector<1x1x32xf32>
    %288 = vector.shape_cast %287 : vector<1x1x32xf32> to vector<1x32xf32>
    %c1_132 = arith.constant 1 : index
    %c0_133 = arith.constant 0 : index
    %c0_134 = arith.constant 0 : index
    %289 = vector.load %arg15[%c1_132, %c0_133, %c0_134] : memref<2x1x32xf32, #tpu.memory_space<vmem>>, vector<1x1x32xf32>
    %290 = vector.shape_cast %289 : vector<1x1x32xf32> to vector<1x32xf32>
    %cst_135 = arith.constant dense<0.000000e+00> : vector<16xf32>
    %291 = vector.multi_reduction <add>, %286, %cst_135 [1] : vector<16x32xf32> to vector<16xf32>
    %292 = vector.shape_cast %291 : vector<16xf32> to vector<16x1xf32>
    %cst_136 = arith.constant 3.200000e+01 : f32
    %293 = vector.broadcast %cst_136 : f32 to vector<16x1xf32>
    %294 = arith.divf %292, %293 : vector<16x1xf32>
    %295 = vector.broadcast %294 : vector<16x1xf32> to vector<16x32xf32>
    %296 = arith.subf %286, %295 : vector<16x32xf32>
    %297 = arith.mulf %296, %296 : vector<16x32xf32>
    %cst_137 = arith.constant dense<0.000000e+00> : vector<16xf32>
    %298 = vector.multi_reduction <add>, %297, %cst_137 [1] : vector<16x32xf32> to vector<16xf32>
    %299 = vector.shape_cast %298 : vector<16xf32> to vector<16x1xf32>
    %cst_138 = arith.constant 3.200000e+01 : f32
    %300 = vector.broadcast %cst_138 : f32 to vector<16x1xf32>
    %301 = arith.divf %299, %300 : vector<16x1xf32>
    %302 = vector.broadcast %294 : vector<16x1xf32> to vector<16x32xf32>
    %303 = arith.subf %286, %302 : vector<16x32xf32>
    %cst_139 = arith.constant 9.99999996E-13 : f32
    %304 = vector.broadcast %cst_139 : f32 to vector<16x1xf32>
    %305 = arith.addf %301, %304 : vector<16x1xf32>
    %306 = math.rsqrt %305 : vector<16x1xf32>
    %307 = vector.broadcast %306 : vector<16x1xf32> to vector<16x32xf32>
    %308 = arith.mulf %303, %307 : vector<16x32xf32>
    %309 = vector.broadcast %288 : vector<1x32xf32> to vector<16x32xf32>
    %310 = arith.mulf %308, %309 : vector<16x32xf32>
    %311 = vector.broadcast %290 : vector<1x32xf32> to vector<16x32xf32>
    %312 = arith.addf %310, %311 : vector<16x32xf32>
    %313 = vector.shape_cast %312 : vector<16x32xf32> to vector<2x8x32xf32>
    %314 = vector.shape_cast %0 : vector<2x8xf32> to vector<2x8x1xf32>
    %315 = vector.broadcast %314 : vector<2x8x1xf32> to vector<2x8x32xf32>
    %316 = arith.mulf %313, %315 : vector<2x8x32xf32>
    %cst_140 = arith.constant dense<0.000000e+00> : vector<2x32xf32>
    %317 = vector.multi_reduction <add>, %316, %cst_140 [1] : vector<2x8x32xf32> to vector<2x32xf32>
    %cst_141 = arith.constant dense<0.000000e+00> : vector<2xf32>
    %318 = vector.multi_reduction <add>, %0, %cst_141 [1] : vector<2x8xf32> to vector<2xf32>
    %319 = vector.shape_cast %318 : vector<2xf32> to vector<2x1xf32>
    %cst_142 = arith.constant 9.99999971E-10 : f32
    %320 = vector.broadcast %cst_142 : f32 to vector<2x1xf32>
    %321 = arith.maximumf %319, %320 : vector<2x1xf32>
    %322 = vector.broadcast %321 : vector<2x1xf32> to vector<2x32xf32>
    %323 = arith.divf %317, %322 : vector<2x32xf32>
    %c0_143 = arith.constant 0 : index
    %c0_144 = arith.constant 0 : index
    %324 = vector.load %arg16[%c0_143, %c0_144] : memref<32x36xf32, #tpu.memory_space<vmem>>, vector<32x36xf32>
    %cst_145 = arith.constant dense<0.000000e+00> : vector<2x36xf32>
    %325 = tpu.matmul %323, %324, %cst_145 {dimension_numbers = #tpu.dot_dimension_numbers<[1], [0], [0], [1], [0, 0, 1, 1], [], []>} : vector<2x32xf32>, vector<32x36xf32>, vector<2x36xf32> -> vector<2x36xf32>
    %c0_146 = arith.constant 0 : index
    %c0_147 = arith.constant 0 : index
    %326 = vector.load %arg17[%c0_146, %c0_147] : memref<1x36xf32, #tpu.memory_space<vmem>>, vector<1x36xf32>
    %327 = vector.broadcast %326 : vector<1x36xf32> to vector<2x36xf32>
    %328 = arith.addf %325, %327 : vector<2x36xf32>
    %c0_148 = arith.constant 0 : index
    %c0_149 = arith.constant 0 : index
    %329 = vector.load %arg18[%c0_148, %c0_149] : memref<2x36xf32, #tpu.memory_space<vmem>>, vector<2x36xf32>
    tpu.vector_store %arg18[%c0_148, %c0_149], %328 {strides = array<i32>} : memref<2x36xf32, #tpu.memory_space<vmem>>, vector<2x36xf32>,
    return
  }
}

</mosaic_0001>

<llo_original>
// kernel: custom_bert_mean_forward.1
$region0: #{custom_bert_mean_forward.1}
  #allocation0 [shape = 'u32[]', space=smem, size = 0x4, offset = 0x4, fixed_abs, tag = 'smem constant byte address 0x4 - core index']
  #allocation1 [shape = 'u32[72,128]{1,0:T(1,128)}', space=vmem, size = 0x9000, scoped, tag = 'internal scratch']
  %s0 = inlined_call_operand.vmem [shape: f32[16,32], index: 0, kind: input, shape index: {}]
  %s1 = inlined_call_operand.vmem [shape: f32[2,8], index: 1, kind: input, shape index: {}]
  %s2 = inlined_call_operand.vmem [shape: f32[1,32], index: 2, kind: input, shape index: {}]
  %s3 = inlined_call_operand.vmem [shape: f32[1,32], index: 3, kind: input, shape index: {}]
  %s4 = inlined_call_operand.vmem [shape: f32[2,32,96], index: 4, kind: input, shape index: {}]
  %s5 = inlined_call_operand.vmem [shape: f32[2,1,96], index: 5, kind: input, shape index: {}]
  %s6 = inlined_call_operand.vmem [shape: f32[2,32,32], index: 6, kind: input, shape index: {}]
  %s7 = inlined_call_operand.vmem [shape: f32[2,1,32], index: 7, kind: input, shape index: {}]
  %s8 = inlined_call_operand.vmem [shape: f32[2,1,32], index: 8, kind: input, shape index: {}]
  %s9 = inlined_call_operand.vmem [shape: f32[2,1,32], index: 9, kind: input, shape index: {}]
  %s10 = inlined_call_operand.vmem [shape: f32[2,32,64], index: 10, kind: input, shape index: {}]
  %s11 = inlined_call_operand.vmem [shape: f32[2,1,64], index: 11, kind: input, shape index: {}]
  %s12 = inlined_call_operand.vmem [shape: f32[2,64,32], index: 12, kind: input, shape index: {}]
  %s13 = inlined_call_operand.vmem [shape: f32[2,1,32], index: 13, kind: input, shape index: {}]
  %s14 = inlined_call_operand.vmem [shape: f32[2,1,32], index: 14, kind: input, shape index: {}]
  %s15 = inlined_call_operand.vmem [shape: f32[2,1,32], index: 15, kind: input, shape index: {}]
  %s16 = inlined_call_operand.vmem [shape: f32[32,36], index: 16, kind: input, shape index: {}]
  %s17 = inlined_call_operand.vmem [shape: f32[1,36], index: 17, kind: input, shape index: {}]
  %s18 = inlined_call_operand.hbm [shape: f32[2,36], index: 18, kind: output, shape index: {}]
  %s19 = sld [smem:[#allocation0]]
  $region82: #{custom_bert_mean_forward.1} parent=0
    _
  %s21 = ssub.s32 1, %s19
  %s22 = scalar_select 0, %s21, %s19
  $region1: #{custom_bert_mean_forward.1} parent=0
    #allocation2 [shape = 'u8[1024]{0}', space=vmem, size = 0x400, scoped, tag = 'output window, operand 0, single buffered']
    #allocation3 [shape = 's32[1]{0}', space=sflag, size = 0x4, scoped, tag = 'scoped memory for custom_bert_mean_forward.1']
    %23 = vsyncpa [#allocation3], 0
    // Predicated region
    $region2: #{custom_bert_mean_forward.1} parent=1 // pred_check
      _
    $region3: #{custom_bert_mean_forward.1} parent=1 // pred_check_branch
      %25 = sbr.rel (0) target = $region5
    $region4: #{custom_bert_mean_forward.1} parent=1 // pred_region
      _
    $region5: #{custom_bert_mean_forward.1} parent=1 // pred_fallthru
      _
    // Predicated region
    $region6: #{custom_bert_mean_forward.1} parent=1 // pred_check
      _
    $region7: #{custom_bert_mean_forward.1} parent=1 // pred_check_branch
      %27 = sbr.rel (0) target = $region9
    $region8: #{custom_bert_mean_forward.1} parent=1 // pred_region
      _
    $region9: #{custom_bert_mean_forward.1} parent=1 // pred_fallthru
      _
    // Predicated region
    $region10: #{custom_bert_mean_forward.1} parent=1 // pred_check
      _
    $region11: #{custom_bert_mean_forward.1} parent=1 // pred_check_branch
      %29 = sbr.rel (0) target = $region13
    $region12: #{custom_bert_mean_forward.1} parent=1 // pred_region
      _
    $region13: #{custom_bert_mean_forward.1} parent=1 // pred_fallthru
      _
    // Predicated region
    $region14: #{custom_bert_mean_forward.1} parent=1 // pred_check
      _
    $region15: #{custom_bert_mean_forward.1} parent=1 // pred_check_branch
      %31 = sbr.rel (0) target = $region17
    $region16: #{custom_bert_mean_forward.1} parent=1 // pred_region
      _
    $region17: #{custom_bert_mean_forward.1} parent=1 // pred_fallthru
      _
    // Predicated region
    $region18: #{custom_bert_mean_forward.1} parent=1 // pred_check
      _
    $region19: #{custom_bert_mean_forward.1} parent=1 // pred_check_branch
      %33 = sbr.rel (0) target = $region21
    $region20: #{custom_bert_mean_forward.1} parent=1 // pred_region
      _
    $region21: #{custom_bert_mean_forward.1} parent=1 // pred_fallthru
      _
    // Predicated region
    $region22: #{custom_bert_mean_forward.1} parent=1 // pred_check
      _
    $region23: #{custom_bert_mean_forward.1} parent=1 // pred_check_branch
      %35 = sbr.rel (0) target = $region25
    $region24: #{custom_bert_mean_forward.1} parent=1 // pred_region
      _
    $region25: #{custom_bert_mean_forward.1} parent=1 // pred_fallthru
      _
    // Predicated region
    $region26: #{custom_bert_mean_forward.1} parent=1 // pred_check
      _
    $region27: #{custom_bert_mean_forward.1} parent=1 // pred_check_branch
      %37 = sbr.rel (0) target = $region29
    $region28: #{custom_bert_mean_forward.1} parent=1 // pred_region
      _
    $region29: #{custom_bert_mean_forward.1} parent=1 // pred_fallthru
      _
    // Predicated region
    $region30: #{custom_bert_mean_forward.1} parent=1 // pred_check
      _
    $region31: #{custom_bert_mean_forward.1} parent=1 // pred_check_branch
      %39 = sbr.rel (0) target = $region33
    $region32: #{custom_bert_mean_forward.1} parent=1 // pred_region
      _
    $region33: #{custom_bert_mean_forward.1} parent=1 // pred_fallthru
      _
    // Predicated region
    $region34: #{custom_bert_mean_forward.1} parent=1 // pred_check
      _
    $region35: #{custom_bert_mean_forward.1} parent=1 // pred_check_branch
      %41 = sbr.rel (0) target = $region37
    $region36: #{custom_bert_mean_forward.1} parent=1 // pred_region
      _
    $region37: #{custom_bert_mean_forward.1} parent=1 // pred_fallthru
      _
    // Predicated region
    $region38: #{custom_bert_mean_forward.1} parent=1 // pred_check
      _
    $region39: #{custom_bert_mean_forward.1} parent=1 // pred_check_branch
      %43 = sbr.rel (0) target = $region41
    $region40: #{custom_bert_mean_forward.1} parent=1 // pred_region
      _
    $region41: #{custom_bert_mean_forward.1} parent=1 // pred_fallthru
      _
    // Predicated region
    $region42: #{custom_bert_mean_forward.1} parent=1 // pred_check
      _
    $region43: #{custom_bert_mean_forward.1} parent=1 // pred_check_branch
      %45 = sbr.rel (0) target = $region45
    $region44: #{custom_bert_mean_forward.1} parent=1 // pred_region
      _
    $region45: #{custom_bert_mean_forward.1} parent=1 // pred_fallthru
      _
    // Predicated region
    $region46: #{custom_bert_mean_forward.1} parent=1 // pred_check
      _
    $region47: #{custom_bert_mean_forward.1} parent=1 // pred_check_branch
      %47 = sbr.rel (0) target = $region49
    $region48: #{custom_bert_mean_forward.1} parent=1 // pred_region
      _
    $region49: #{custom_bert_mean_forward.1} parent=1 // pred_fallthru
      _
    // Predicated region
    $region50: #{custom_bert_mean_forward.1} parent=1 // pred_check
      _
    $region51: #{custom_bert_mean_forward.1} parent=1 // pred_check_branch
      %49 = sbr.rel (0) target = $region53
    $region52: #{custom_bert_mean_forward.1} parent=1 // pred_region
      _
    $region53: #{custom_bert_mean_forward.1} parent=1 // pred_fallthru
      _
    // Predicated region
    $region54: #{custom_bert_mean_forward.1} parent=1 // pred_check
      _
    $region55: #{custom_bert_mean_forward.1} parent=1 // pred_check_branch
      %51 = sbr.rel (0) target = $region57
    $region56: #{custom_bert_mean_forward.1} parent=1 // pred_region
      _
    $region57: #{custom_bert_mean_forward.1} parent=1 // pred_fallthru
      _
    // Predicated region
    $region58: #{custom_bert_mean_forward.1} parent=1 // pred_check
      _
    $region59: #{custom_bert_mean_forward.1} parent=1 // pred_check_branch
      %53 = sbr.rel (0) target = $region61
    $region60: #{custom_bert_mean_forward.1} parent=1 // pred_region
      _
    $region61: #{custom_bert_mean_forward.1} parent=1 // pred_fallthru
      _
    // Predicated region
    $region62: #{custom_bert_mean_forward.1} parent=1 // pred_check
      _
    $region63: #{custom_bert_mean_forward.1} parent=1 // pred_check_branch
      %55 = sbr.rel (0) target = $region65
    $region64: #{custom_bert_mean_forward.1} parent=1 // pred_region
      _
    $region65: #{custom_bert_mean_forward.1} parent=1 // pred_fallthru
      _
    // Predicated region
    $region66: #{custom_bert_mean_forward.1} parent=1 // pred_check
      _
    $region67: #{custom_bert_mean_forward.1} parent=1 // pred_check_branch
      %57 = sbr.rel (0) target = $region69
    $region68: #{custom_bert_mean_forward.1} parent=1 // pred_region
      _
    $region69: #{custom_bert_mean_forward.1} parent=1 // pred_fallthru
      _
    // Predicated region
    $region70: #{custom_bert_mean_forward.1} parent=1 // pred_check
      _
    $region71: #{custom_bert_mean_forward.1} parent=1 // pred_check_branch
      %59 = sbr.rel (0) target = $region73
    $region72: #{custom_bert_mean_forward.1} parent=1 // pred_region
      _
    $region73: #{custom_bert_mean_forward.1} parent=1 // pred_fallthru
      _
    %v60 = vld [vmem:[%s1] sm:$0x3]
    %v61 = vsub.f32 %v60, 1.0
    %v62 = vmul.f32 %v61, 1e+09
    %v64 = vrot.slane %v62, 1
    %v65 = vld [vmem:[%s0] sm:$0xff]
    %v66 = vld [vmem:[%s0 + $0x8] sm:$0xff]
    %v67 = vld [vmem:[%s2] sm:$0x1]
    %v68 = vld [vmem:[%s3] sm:$0x1]
    %vm69 = vcmask 261120
    %v70 = vsel %vm69, %v65, 0.0
    %71 = vadd.xlane.f32.xlu0 %v70
    %v72 = vpop.xlane.xlu0 %71
    %v73 = vsel %vm69, %v66, 0.0
    %74 = vadd.xlane.f32.xlu0 %v73
    %v75 = vpop.xlane.xlu0 %74
    %v76 = vrcp.pop 32.0
    %v77 = vmul.f32 32.0, %v76
    %v78 = vsub.f32 1.0, %v77
    %v79 = vmul.f32 %v76, %v78
    %v80 = vadd.f32 %v76, %v79
    %vm81 = vweird.f32 %v76
    %v82 = vsel %vm81, %v76, %v80
    %v83 = vmul.f32 %v72, %v82
    %v84 = vmul.f32 %v75, %v82
    %v85 = vsub.f32 %v65, %v83
    %v86 = vsub.f32 %v66, %v84
    %v87 = vmul.f32 %v85, %v85
    %v88 = vmul.f32 %v86, %v86
    %v89 = vsel %vm69, %v87, 0.0
    %90 = vadd.xlane.f32.xlu0 %v89
    %v91 = vpop.xlane.xlu0 %90
    %v92 = vsel %vm69, %v88, 0.0
    %93 = vadd.xlane.f32.xlu0 %v92
    %v94 = vpop.xlane.xlu0 %93
    %v95 = vmul.f32 %v91, %v82
    %v96 = vmul.f32 %v94, %v82
    %v97 = vadd.f32 %v95, 1e-12
    %v98 = vadd.f32 %v96, 1e-12
    %v99 = vrsqrt.pop %v97
    %v100 = vmul.f32 %v99, %v97
    %v101 = vmul.f32 %v100, %v99
    %v102 = vmul.f32 0.5, %v101
    %v103 = vsub.f32 1.5, %v102
    %v104 = vmul.f32 %v99, %v103
    %vm105 = vweird.f32 %v97
    %vm106 = vweird.f32 %v99
    %vm107 = vmor %vm105, %vm106
    %v108 = vsel %vm107, %v99, %v104
    %v109 = vrsqrt.pop %v98
    %v110 = vmul.f32 %v109, %v98
    %v111 = vmul.f32 %v110, %v109
    %v112 = vmul.f32 0.5, %v111
    %v113 = vsub.f32 1.5, %v112
    %v114 = vmul.f32 %v109, %v113
    %vm115 = vweird.f32 %v98
    %vm116 = vweird.f32 %v109
    %vm117 = vmor %vm115, %vm116
    %v118 = vsel %vm117, %v109, %v114
    %v119 = vmul.f32 %v85, %v108
    %v120 = vmul.f32 %v86, %v118
    %v122 = vperm.slane %v67, 0
    %v124 = vmul.f32 %v119, %v122
    %v125 = vmul.f32 %v120, %v122
    %v127 = vperm.slane %v68, 0
    %v129 = vadd.f32 %v124, %v127
    %v130 = vadd.f32 %v125, %v127
    %v131 = vld [vmem:[%s4] sm:$0xff]
    %v132 = vld [vmem:[%s4 + $0x8] sm:$0xff]
    %v133 = vld [vmem:[%s4 + $0x10] sm:$0xff]
    %v134 = vld [vmem:[%s4 + $0x18] sm:$0xff]
    %v135 = vld [vmem:[%s5] sm:$0x1]
    %v137 = vperm.slane %v135, 0
    %v140 = vsel %vm69, %v129, 0
    %v143 = vsel %vm69, %v130, 0
    %145 = vmatpush.msra.mxu0 0.0
    %146 = vmatpush.msra.mxu0 0.0
    %147 = vmatpush.msra.mxu0 0.0
    %148 = vmatpush.msra.mxu0 0.0
    %149 = vmatpush.msra.mxu0 0.0
    %150 = vmatpush.msra.mxu0 0.0
    %151 = vmatpush.msra.mxu0 0.0
    %152 = vmatpush.msra.mxu0 0.0
    %153 = vmatpush.msra.mxu0 0.0
    %154 = vmatpush.msra.mxu0 0.0
    %155 = vmatpush.msra.mxu0 0.0
    %156 = vmatpush.msra.mxu0 0.0
    %157 = vmatpush.msra.mxu0 %v134
    %158 = vmatpush.msra.mxu0 %v133
    %159 = vmatpush.msra.mxu0 %v132
    %160 = vmatpush.msra.mxu0 %v131
    %161 = vmatmul.f32.gmra.mxu0 %v140
    %v162 = vpop.f32.mrf.mxu0
    %v163 = vadd.f32 %v137, %v162
    %164 = vmatmul.f32.gmra.mxu0 %v143
    %v165 = vpop.f32.mrf.mxu0
    %v166 = vadd.f32 %v137, %v165
    %167 = vdwg.mxu0
    %169 = vrot.lane.b32.xlu0 %v163, 96
    %v170 = vpop.permute.xlu0 %169
    %vm171 = vcmask 130048
    %v172 = vsel %vm171, %v163, 0
    %v174 = vsel %vm171, %v170, 0
    %176 = vmatpush.xpose.msra.mxu0 0.0
    %177 = vmatpush.xpose.msra.mxu0 0.0
    %178 = vmatpush.xpose.msra.mxu0 0.0
    %179 = vmatpush.xpose.msra.mxu0 0.0
    %180 = vmatpush.xpose.msra.mxu0 0.0
    %181 = vmatpush.xpose.msra.mxu0 0.0
    %182 = vmatpush.xpose.msra.mxu0 0.0
    %183 = vmatpush.xpose.msra.mxu0 0.0
    %184 = vmatpush.xpose.msra.mxu0 0.0
    %185 = vmatpush.xpose.msra.mxu0 0.0
    %186 = vmatpush.xpose.msra.mxu0 0.0
    %187 = vmatpush.xpose.msra.mxu0 0.0
    %188 = vmatpush.xpose.msra.mxu0 0.0
    %189 = vmatpush.xpose.msra.mxu0 0.0
    %190 = vmatpush.xpose.msra.mxu0 0.0
    %191 = vmatpush.xpose.msra.mxu0 %v174
    %192 = vmatmul.f32.gmra.mxu0 %v172
    %v193 = vpop.f32.mrf.mxu0
    %v194 = vadd.f32 0.0, %v193
    %195 = vdwg.mxu0
    %197 = vrot.lane.b32.xlu0 %v166, 96
    %v198 = vpop.permute.xlu0 %197
    %v199 = vsel %vm171, %v166, 0
    %v201 = vsel %vm171, %v198, 0
    %203 = vmatpush.xpose.msra.mxu0 0.0
    %204 = vmatpush.xpose.msra.mxu0 0.0
    %205 = vmatpush.xpose.msra.mxu0 0.0
    %206 = vmatpush.xpose.msra.mxu0 0.0
    %207 = vmatpush.xpose.msra.mxu0 0.0
    %208 = vmatpush.xpose.msra.mxu0 0.0
    %209 = vmatpush.xpose.msra.mxu0 0.0
    %210 = vmatpush.xpose.msra.mxu0 0.0
    %211 = vmatpush.xpose.msra.mxu0 0.0
    %212 = vmatpush.xpose.msra.mxu0 0.0
    %213 = vmatpush.xpose.msra.mxu0 0.0
    %214 = vmatpush.xpose.msra.mxu0 0.0
    %215 = vmatpush.xpose.msra.mxu0 0.0
    %216 = vmatpush.xpose.msra.mxu0 0.0
    %217 = vmatpush.xpose.msra.mxu0 0.0
    %218 = vmatpush.xpose.msra.mxu0 %v201
    %219 = vmatmul.f32.gmra.mxu0 %v199
    %v220 = vpop.f32.mrf.mxu0
    %v221 = vadd.f32 0.0, %v220
    %222 = vdwg.mxu0
    %v223 = vmul.f32 %v194, 0.25
    %v224 = vmul.f32 %v221, 0.25
    %v225 = vperm.slane %v62, 0
    %v226 = vperm.slane %v64, 0
    %v229 = vadd.f32 %v223, %v225
    %v230 = vadd.f32 %v224, %v226
    %vm231 = vcmask 64512
    %v232 = vsel %vm231, %v229, -inf
    %233 = vmax.xlane.f32.xlu0 %v232
    %v234 = vpop.xlane.xlu0 %233
    %v235 = vsel %vm231, %v230, -inf
    %236 = vmax.xlane.f32.xlu0 %v235
    %v237 = vpop.xlane.xlu0 %236
    %v238 = vsub.f32 %v229, %v234
    %v239 = vsub.f32 %v230, %v237
    %v240 = vmul.f32 %v238, 1.442695
    %v241 = vpow.pop %v240
    %v242 = vmul.f32 %v239, 1.442695
    %v243 = vpow.pop %v242
    %v244 = vsel %vm231, %v241, 0.0
    %245 = vadd.xlane.f32.xlu0 %v244
    %v246 = vpop.xlane.xlu0 %245
    %v247 = vsel %vm231, %v243, 0.0
    %248 = vadd.xlane.f32.xlu0 %v247
    %v249 = vpop.xlane.xlu0 %248
    %v250 = vrcp.pop %v246
    %v251 = vrcp.pop %v249
    %v252 = vmul.f32 %v241, %v250
    %v253 = vmul.f32 %v243, %v251
    %254 = vrot.lane.b32.xlu0 %v163, 64
    %v255 = vpop.permute.xlu0 %254
    %v258 = vsel %vm231, %v252, 0
    %260 = vmatpush.msra.mxu0 0.0
    %261 = vmatpush.msra.mxu0 0.0
    %262 = vmatpush.msra.mxu0 0.0
    %263 = vmatpush.msra.mxu0 0.0
    %264 = vmatpush.msra.mxu0 0.0
    %265 = vmatpush.msra.mxu0 0.0
    %266 = vmatpush.msra.mxu0 0.0
    %267 = vmatpush.msra.mxu0 0.0
    %268 = vmatpush.msra.mxu0 0.0
    %269 = vmatpush.msra.mxu0 0.0
    %270 = vmatpush.msra.mxu0 0.0
    %271 = vmatpush.msra.mxu0 0.0
    %272 = vmatpush.msra.mxu0 0.0
    %273 = vmatpush.msra.mxu0 0.0
    %274 = vmatpush.msra.mxu0 0.0
    %275 = vmatpush.msra.mxu0 %v255
    %276 = vmatmul.f32.gmra.mxu0 %v258
    %v277 = vpop.f32.mrf.mxu0
    %v278 = vadd.f32 0.0, %v277
    %279 = vdwg.mxu0
    %280 = vrot.lane.b32.xlu0 %v166, 64
    %v281 = vpop.permute.xlu0 %280
    %v284 = vsel %vm231, %v253, 0
    %286 = vmatpush.msra.mxu0 0.0
    %287 = vmatpush.msra.mxu0 0.0
    %288 = vmatpush.msra.mxu0 0.0
    %289 = vmatpush.msra.mxu0 0.0
    %290 = vmatpush.msra.mxu0 0.0
    %291 = vmatpush.msra.mxu0 0.0
    %292 = vmatpush.msra.mxu0 0.0
    %293 = vmatpush.msra.mxu0 0.0
    %294 = vmatpush.msra.mxu0 0.0
    %295 = vmatpush.msra.mxu0 0.0
    %296 = vmatpush.msra.mxu0 0.0
    %297 = vmatpush.msra.mxu0 0.0
    %298 = vmatpush.msra.mxu0 0.0
    %299 = vmatpush.msra.mxu0 0.0
    %300 = vmatpush.msra.mxu0 0.0
    %301 = vmatpush.msra.mxu0 %v281
    %302 = vmatmul.f32.gmra.mxu0 %v284
    %v303 = vpop.f32.mrf.mxu0
    %v304 = vadd.f32 0.0, %v303
    %305 = vdwg.mxu0
    %306 = vrot.lane.b32.xlu0 %v163, 112
    %v307 = vpop.permute.xlu0 %306
    %308 = vrot.lane.b32.xlu0 %v163, 80
    %v309 = vpop.permute.xlu0 %308
    %v310 = vsel %vm171, %v307, 0
    %v312 = vsel %vm171, %v309, 0
    %314 = vmatpush.xpose.msra.mxu0 0.0
    %315 = vmatpush.xpose.msra.mxu0 0.0
    %316 = vmatpush.xpose.msra.mxu0 0.0
    %317 = vmatpush.xpose.msra.mxu0 0.0
    %318 = vmatpush.xpose.msra.mxu0 0.0
    %319 = vmatpush.xpose.msra.mxu0 0.0
    %320 = vmatpush.xpose.msra.mxu0 0.0
    %321 = vmatpush.xpose.msra.mxu0 0.0
    %322 = vmatpush.xpose.msra.mxu0 0.0
    %323 = vmatpush.xpose.msra.mxu0 0.0
    %324 = vmatpush.xpose.msra.mxu0 0.0
    %325 = vmatpush.xpose.msra.mxu0 0.0
    %326 = vmatpush.xpose.msra.mxu0 0.0
    %327 = vmatpush.xpose.msra.mxu0 0.0
    %328 = vmatpush.xpose.msra.mxu0 0.0
    %329 = vmatpush.xpose.msra.mxu0 %v312
    %330 = vmatmul.f32.gmra.mxu0 %v310
    %v331 = vpop.f32.mrf.mxu0
    %v332 = vadd.f32 0.0, %v331
    %333 = vdwg.mxu0
    %334 = vrot.lane.b32.xlu0 %v166, 112
    %v335 = vpop.permute.xlu0 %334
    %336 = vrot.lane.b32.xlu0 %v166, 80
    %v337 = vpop.permute.xlu0 %336
    %v338 = vsel %vm171, %v335, 0
    %v340 = vsel %vm171, %v337, 0
    %342 = vmatpush.xpose.msra.mxu0 0.0
    %343 = vmatpush.xpose.msra.mxu0 0.0
    %344 = vmatpush.xpose.msra.mxu0 0.0
    %345 = vmatpush.xpose.msra.mxu0 0.0
    %346 = vmatpush.xpose.msra.mxu0 0.0
    %347 = vmatpush.xpose.msra.mxu0 0.0
    %348 = vmatpush.xpose.msra.mxu0 0.0
    %349 = vmatpush.xpose.msra.mxu0 0.0
    %350 = vmatpush.xpose.msra.mxu0 0.0
    %351 = vmatpush.xpose.msra.mxu0 0.0
    %352 = vmatpush.xpose.msra.mxu0 0.0
    %353 = vmatpush.xpose.msra.mxu0 0.0
    %354 = vmatpush.xpose.msra.mxu0 0.0
    %355 = vmatpush.xpose.msra.mxu0 0.0
    %356 = vmatpush.xpose.msra.mxu0 0.0
    %357 = vmatpush.xpose.msra.mxu0 %v340
    %358 = vmatmul.f32.gmra.mxu0 %v338
    %v359 = vpop.f32.mrf.mxu0
    %v360 = vadd.f32 0.0, %v359
    %361 = vdwg.mxu0
    %v362 = vmul.f32 %v332, 0.25
    %v363 = vmul.f32 %v360, 0.25
    %v364 = vadd.f32 %v362, %v225
    %v365 = vadd.f32 %v363, %v226
    %v366 = vsel %vm231, %v364, -inf
    %367 = vmax.xlane.f32.xlu0 %v366
    %v368 = vpop.xlane.xlu0 %367
    %v369 = vsel %vm231, %v365, -inf
    %370 = vmax.xlane.f32.xlu0 %v369
    %v371 = vpop.xlane.xlu0 %370
    %v372 = vsub.f32 %v364, %v368
    %v373 = vsub.f32 %v365, %v371
    %v374 = vmul.f32 %v372, 1.442695
    %v375 = vpow.pop %v374
    %v376 = vmul.f32 %v373, 1.442695
    %v377 = vpow.pop %v376
    %v378 = vsel %vm231, %v375, 0.0
    %379 = vadd.xlane.f32.xlu0 %v378
    %v380 = vpop.xlane.xlu0 %379
    %v381 = vsel %vm231, %v377, 0.0
    %382 = vadd.xlane.f32.xlu0 %v381
    %v383 = vpop.xlane.xlu0 %382
    %v384 = vrcp.pop %v380
    %v385 = vrcp.pop %v383
    %v386 = vmul.f32 %v375, %v384
    %v387 = vmul.f32 %v377, %v385
    %388 = vrot.lane.b32.xlu0 %v163, 48
    %v389 = vpop.permute.xlu0 %388
    %v392 = vsel %vm231, %v386, 0
    %394 = vmatpush.msra.mxu0 0.0
    %395 = vmatpush.msra.mxu0 0.0
    %396 = vmatpush.msra.mxu0 0.0
    %397 = vmatpush.msra.mxu0 0.0
    %398 = vmatpush.msra.mxu0 0.0
    %399 = vmatpush.msra.mxu0 0.0
    %400 = vmatpush.msra.mxu0 0.0
    %401 = vmatpush.msra.mxu0 0.0
    %402 = vmatpush.msra.mxu0 0.0
    %403 = vmatpush.msra.mxu0 0.0
    %404 = vmatpush.msra.mxu0 0.0
    %405 = vmatpush.msra.mxu0 0.0
    %406 = vmatpush.msra.mxu0 0.0
    %407 = vmatpush.msra.mxu0 0.0
    %408 = vmatpush.msra.mxu0 0.0
    %409 = vmatpush.msra.mxu0 %v389
    %410 = vmatmul.f32.gmra.mxu0 %v392
    %v411 = vpop.f32.mrf.mxu0
    %v412 = vadd.f32 0.0, %v411
    %413 = vdwg.mxu0
    %414 = vrot.lane.b32.xlu0 %v166, 48
    %v415 = vpop.permute.xlu0 %414
    %v418 = vsel %vm231, %v387, 0
    %420 = vmatpush.msra.mxu0 0.0
    %421 = vmatpush.msra.mxu0 0.0
    %422 = vmatpush.msra.mxu0 0.0
    %423 = vmatpush.msra.mxu0 0.0
    %424 = vmatpush.msra.mxu0 0.0
    %425 = vmatpush.msra.mxu0 0.0
    %426 = vmatpush.msra.mxu0 0.0
    %427 = vmatpush.msra.mxu0 0.0
    %428 = vmatpush.msra.mxu0 0.0
    %429 = vmatpush.msra.mxu0 0.0
    %430 = vmatpush.msra.mxu0 0.0
    %431 = vmatpush.msra.mxu0 0.0
    %432 = vmatpush.msra.mxu0 0.0
    %433 = vmatpush.msra.mxu0 0.0
    %434 = vmatpush.msra.mxu0 0.0
    %435 = vmatpush.msra.mxu0 %v415
    %436 = vmatmul.f32.gmra.mxu0 %v418
    %v437 = vpop.f32.mrf.mxu0
    %v438 = vadd.f32 0.0, %v437
    %439 = vdwg.mxu0
    %442 = vrot.lane.b32.xlu0 %v412, 16
    %v443 = vpop.permute.xlu0 %442
    %444 = vrot.lane.b32.xlu0 %v438, 16
    %v445 = vpop.permute.xlu0 %444
    %v448 = vsel %vm171, %v278, %v443
    %v449 = vsel %vm171, %v304, %v445
    %v450 = vld [vmem:[%s6] sm:$0xff]
    %v451 = vld [vmem:[%s6 + $0x8] sm:$0xff]
    %v452 = vld [vmem:[%s6 + $0x10] sm:$0xff]
    %v453 = vld [vmem:[%s6 + $0x18] sm:$0xff]
    %v454 = vld [vmem:[%s7] sm:$0x1]
    %v456 = vperm.slane %v454, 0
    %v459 = vsel %vm69, %v448, 0
    %v462 = vsel %vm69, %v449, 0
    %464 = vmatpush.msra.mxu0 0.0
    %465 = vmatpush.msra.mxu0 0.0
    %466 = vmatpush.msra.mxu0 0.0
    %467 = vmatpush.msra.mxu0 0.0
    %468 = vmatpush.msra.mxu0 0.0
    %469 = vmatpush.msra.mxu0 0.0
    %470 = vmatpush.msra.mxu0 0.0
    %471 = vmatpush.msra.mxu0 0.0
    %472 = vmatpush.msra.mxu0 0.0
    %473 = vmatpush.msra.mxu0 0.0
    %474 = vmatpush.msra.mxu0 0.0
    %475 = vmatpush.msra.mxu0 0.0
    %476 = vmatpush.msra.mxu0 %v453
    %477 = vmatpush.msra.mxu0 %v452
    %478 = vmatpush.msra.mxu0 %v451
    %479 = vmatpush.msra.mxu0 %v450
    %480 = vmatmul.f32.gmra.mxu0 %v459
    %v481 = vpop.f32.mrf.mxu0
    %v482 = vadd.f32 %v456, %v481
    %483 = vmatmul.f32.gmra.mxu0 %v462
    %v484 = vpop.f32.mrf.mxu0
    %v485 = vadd.f32 %v456, %v484
    %486 = vdwg.mxu0
    %v487 = vadd.f32 %v129, %v482
    %v488 = vadd.f32 %v130, %v485
    %v489 = vld [vmem:[%s8] sm:$0x1]
    %v490 = vld [vmem:[%s9] sm:$0x1]
    %v491 = vsel %vm69, %v487, 0.0
    %492 = vadd.xlane.f32.xlu0 %v491
    %v493 = vpop.xlane.xlu0 %492
    %v494 = vsel %vm69, %v488, 0.0
    %495 = vadd.xlane.f32.xlu0 %v494
    %v496 = vpop.xlane.xlu0 %495
    %v497 = vmul.f32 %v493, %v82
    %v498 = vmul.f32 %v496, %v82
    %v499 = vsub.f32 %v487, %v497
    %v500 = vsub.f32 %v488, %v498
    %v501 = vmul.f32 %v499, %v499
    %v502 = vmul.f32 %v500, %v500
    %v503 = vsel %vm69, %v501, 0.0
    %504 = vadd.xlane.f32.xlu0 %v503
    %v505 = vpop.xlane.xlu0 %504
    %v506 = vsel %vm69, %v502, 0.0
    %507 = vadd.xlane.f32.xlu0 %v506
    %v508 = vpop.xlane.xlu0 %507
    %v509 = vmul.f32 %v505, %v82
    %v510 = vmul.f32 %v508, %v82
    %v511 = vadd.f32 %v509, 1e-12
    %v512 = vadd.f32 %v510, 1e-12
    %v513 = vrsqrt.pop %v511
    %v514 = vmul.f32 %v513, %v511
    %v515 = vmul.f32 %v514, %v513
    %v516 = vmul.f32 0.5, %v515
    %v517 = vsub.f32 1.5, %v516
    %v518 = vmul.f32 %v513, %v517
    %vm519 = vweird.f32 %v511
    %vm520 = vweird.f32 %v513
    %vm521 = vmor %vm519, %vm520
    %v522 = vsel %vm521, %v513, %v518
    %v523 = vrsqrt.pop %v512
    %v524 = vmul.f32 %v523, %v512
    %v525 = vmul.f32 %v524, %v523
    %v526 = vmul.f32 0.5, %v525
    %v527 = vsub.f32 1.5, %v526
    %v528 = vmul.f32 %v523, %v527
    %vm529 = vweird.f32 %v512
    %vm530 = vweird.f32 %v523
    %vm531 = vmor %vm529, %vm530
    %v532 = vsel %vm531, %v523, %v528
    %v533 = vmul.f32 %v499, %v522
    %v534 = vmul.f32 %v500, %v532
    %v536 = vperm.slane %v489, 0
    %v538 = vmul.f32 %v533, %v536
    %v539 = vmul.f32 %v534, %v536
    %v541 = vperm.slane %v490, 0
    %v543 = vadd.f32 %v538, %v541
    %v544 = vadd.f32 %v539, %v541
    %v545 = vld [vmem:[%s10] sm:$0xff]
    %v546 = vld [vmem:[%s10 + $0x8] sm:$0xff]
    %v547 = vld [vmem:[%s10 + $0x10] sm:$0xff]
    %v548 = vld [vmem:[%s10 + $0x18] sm:$0xff]
    %v549 = vld [vmem:[%s11] sm:$0x1]
    %v551 = vperm.slane %v549, 0
    %v554 = vsel %vm69, %v543, 0
    %v557 = vsel %vm69, %v544, 0
    %559 = vmatpush.msra.mxu0 0.0
    %560 = vmatpush.msra.mxu0 0.0
    %561 = vmatpush.msra.mxu0 0.0
    %562 = vmatpush.msra.mxu0 0.0
    %563 = vmatpush.msra.mxu0 0.0
    %564 = vmatpush.msra.mxu0 0.0
    %565 = vmatpush.msra.mxu0 0.0
    %566 = vmatpush.msra.mxu0 0.0
    %567 = vmatpush.msra.mxu0 0.0
    %568 = vmatpush.msra.mxu0 0.0
    %569 = vmatpush.msra.mxu0 0.0
    %570 = vmatpush.msra.mxu0 0.0
    %571 = vmatpush.msra.mxu0 %v548
    %572 = vmatpush.msra.mxu0 %v547
    %573 = vmatpush.msra.mxu0 %v546
    %574 = vmatpush.msra.mxu0 %v545
    %575 = vmatmul.f32.gmra.mxu0 %v554
    %v576 = vpop.f32.mrf.mxu0
    %v577 = vadd.f32 %v551, %v576
    %578 = vmatmul.f32.gmra.mxu0 %v557
    %v579 = vpop.f32.mrf.mxu0
    %v580 = vadd.f32 %v551, %v579
    %581 = vdwg.mxu0
    %v582 = vmul.f32 %v577, %v577
    %v583 = vmul.f32 %v580, %v580
    %v584 = vmul.f32 %v577, %v582
    %v585 = vmul.f32 %v580, %v583
    %v586 = vmul.f32 %v584, 0.044715
    %v587 = vmul.f32 %v585, 0.044715
    %v588 = vadd.f32 %v577, %v586
    %v589 = vadd.f32 %v580, %v587
    %v590 = vmul.f32 %v588, 0.7978846
    %v591 = vmul.f32 %v589, 0.7978846
    %v592 = vtanh.pop %v590
    %v593 = vtanh.pop %v591
    %v594 = vadd.f32 %v592, 1.0
    %v595 = vadd.f32 %v593, 1.0
    %v596 = vmul.f32 %v594, 0.5
    %v597 = vmul.f32 %v595, 0.5
    %v598 = vmul.f32 %v577, %v596
    %v599 = vmul.f32 %v580, %v597
    %v600 = vld [vmem:[%s12] sm:$0xff]
    %v601 = vld [vmem:[%s12 + $0x8] sm:$0xff]
    %v602 = vld [vmem:[%s12 + $0x10] sm:$0xff]
    %v603 = vld [vmem:[%s12 + $0x18] sm:$0xff]
    %v604 = vld [vmem:[%s12 + $0x20] sm:$0xff]
    %v605 = vld [vmem:[%s12 + $0x28] sm:$0xff]
    %v606 = vld [vmem:[%s12 + $0x30] sm:$0xff]
    %v607 = vld [vmem:[%s12 + $0x38] sm:$0xff]
    %v608 = vld [vmem:[%s13] sm:$0x1]
    %v610 = vperm.slane %v608, 0
    %vm612 = vcmask 523264
    %v614 = vsel %vm612, %v598, 0
    %v617 = vsel %vm612, %v599, 0
    %619 = vmatpush.msra.mxu0 0.0
    %620 = vmatpush.msra.mxu0 0.0
    %621 = vmatpush.msra.mxu0 0.0
    %622 = vmatpush.msra.mxu0 0.0
    %623 = vmatpush.msra.mxu0 0.0
    %624 = vmatpush.msra.mxu0 0.0
    %625 = vmatpush.msra.mxu0 0.0
    %626 = vmatpush.msra.mxu0 0.0
    %627 = vmatpush.msra.mxu0 %v607
    %628 = vmatpush.msra.mxu0 %v606
    %629 = vmatpush.msra.mxu0 %v605
    %630 = vmatpush.msra.mxu0 %v604
    %631 = vmatpush.msra.mxu0 %v603
    %632 = vmatpush.msra.mxu0 %v602
    %633 = vmatpush.msra.mxu0 %v601
    %634 = vmatpush.msra.mxu0 %v600
    %635 = vmatmul.f32.gmra.mxu0 %v614
    %v636 = vpop.f32.mrf.mxu0
    %v637 = vadd.f32 %v610, %v636
    %638 = vmatmul.f32.gmra.mxu0 %v617
    %v639 = vpop.f32.mrf.mxu0
    %v640 = vadd.f32 %v610, %v639
    %641 = vdwg.mxu0
    %v642 = vadd.f32 %v543, %v637
    %v643 = vadd.f32 %v544, %v640
    %v644 = vld [vmem:[%s14] sm:$0x1]
    %v645 = vld [vmem:[%s15] sm:$0x1]
    %v646 = vsel %vm69, %v642, 0.0
    %647 = vadd.xlane.f32.xlu0 %v646
    %v648 = vpop.xlane.xlu0 %647
    %v649 = vsel %vm69, %v643, 0.0
    %650 = vadd.xlane.f32.xlu0 %v649
    %v651 = vpop.xlane.xlu0 %650
    %v652 = vmul.f32 %v648, %v82
    %v653 = vmul.f32 %v651, %v82
    %v654 = vsub.f32 %v642, %v652
    %v655 = vsub.f32 %v643, %v653
    %v656 = vmul.f32 %v654, %v654
    %v657 = vmul.f32 %v655, %v655
    %v658 = vsel %vm69, %v656, 0.0
    %659 = vadd.xlane.f32.xlu0 %v658
    %v660 = vpop.xlane.xlu0 %659
    %v661 = vsel %vm69, %v657, 0.0
    %662 = vadd.xlane.f32.xlu0 %v661
    %v663 = vpop.xlane.xlu0 %662
    %v664 = vmul.f32 %v660, %v82
    %v665 = vmul.f32 %v663, %v82
    %v666 = vadd.f32 %v664, 1e-12
    %v667 = vadd.f32 %v665, 1e-12
    %v668 = vrsqrt.pop %v666
    %v669 = vmul.f32 %v668, %v666
    %v670 = vmul.f32 %v669, %v668
    %v671 = vmul.f32 0.5, %v670
    %v672 = vsub.f32 1.5, %v671
    %v673 = vmul.f32 %v668, %v672
    %vm674 = vweird.f32 %v666
    %vm675 = vweird.f32 %v668
    %vm676 = vmor %vm674, %vm675
    %v677 = vsel %vm676, %v668, %v673
    %v678 = vrsqrt.pop %v667
    %v679 = vmul.f32 %v678, %v667
    %v680 = vmul.f32 %v679, %v678
    %v681 = vmul.f32 0.5, %v680
    %v682 = vsub.f32 1.5, %v681
    %v683 = vmul.f32 %v678, %v682
    %vm684 = vweird.f32 %v667
    %vm685 = vweird.f32 %v678
    %vm686 = vmor %vm684, %vm685
    %v687 = vsel %vm686, %v678, %v683
    %v688 = vmul.f32 %v654, %v677
    %v689 = vmul.f32 %v655, %v687
    %v691 = vperm.slane %v644, 0
    %v693 = vmul.f32 %v688, %v691
    %v694 = vmul.f32 %v689, %v691
    %v696 = vperm.slane %v645, 0
    %v698 = vadd.f32 %v693, %v696
    %v699 = vadd.f32 %v694, %v696
    %s700 = scalar_lea.vmem %s4, 32
    %v701 = vld [vmem:[%s700] sm:$0xff]
    %v702 = vld [vmem:[%s700 + $0x8] sm:$0xff]
    %v703 = vld [vmem:[%s700 + $0x10] sm:$0xff]
    %v704 = vld [vmem:[%s700 + $0x18] sm:$0xff]
    %s705 = scalar_lea.vmem %s5, 1
    %v706 = vld [vmem:[%s705] sm:$0x1]
    %v708 = vperm.slane %v706, 0
    %v711 = vsel %vm69, %v698, 0
    %v714 = vsel %vm69, %v699, 0
    %716 = vmatpush.msra.mxu0 0.0
    %717 = vmatpush.msra.mxu0 0.0
    %718 = vmatpush.msra.mxu0 0.0
    %719 = vmatpush.msra.mxu0 0.0
    %720 = vmatpush.msra.mxu0 0.0
    %721 = vmatpush.msra.mxu0 0.0
    %722 = vmatpush.msra.mxu0 0.0
    %723 = vmatpush.msra.mxu0 0.0
    %724 = vmatpush.msra.mxu0 0.0
    %725 = vmatpush.msra.mxu0 0.0
    %726 = vmatpush.msra.mxu0 0.0
    %727 = vmatpush.msra.mxu0 0.0
    %728 = vmatpush.msra.mxu0 %v704
    %729 = vmatpush.msra.mxu0 %v703
    %730 = vmatpush.msra.mxu0 %v702
    %731 = vmatpush.msra.mxu0 %v701
    %732 = vmatmul.f32.gmra.mxu0 %v711
    %v733 = vpop.f32.mrf.mxu0
    %v734 = vadd.f32 %v708, %v733
    %735 = vmatmul.f32.gmra.mxu0 %v714
    %v736 = vpop.f32.mrf.mxu0
    %v737 = vadd.f32 %v708, %v736
    %738 = vdwg.mxu0
    %740 = vrot.lane.b32.xlu0 %v734, 96
    %v741 = vpop.permute.xlu0 %740
    %v742 = vsel %vm171, %v734, 0
    %v744 = vsel %vm171, %v741, 0
    %746 = vmatpush.xpose.msra.mxu0 0.0
    %747 = vmatpush.xpose.msra.mxu0 0.0
    %748 = vmatpush.xpose.msra.mxu0 0.0
    %749 = vmatpush.xpose.msra.mxu0 0.0
    %750 = vmatpush.xpose.msra.mxu0 0.0
    %751 = vmatpush.xpose.msra.mxu0 0.0
    %752 = vmatpush.xpose.msra.mxu0 0.0
    %753 = vmatpush.xpose.msra.mxu0 0.0
    %754 = vmatpush.xpose.msra.mxu0 0.0
    %755 = vmatpush.xpose.msra.mxu0 0.0
    %756 = vmatpush.xpose.msra.mxu0 0.0
    %757 = vmatpush.xpose.msra.mxu0 0.0
    %758 = vmatpush.xpose.msra.mxu0 0.0
    %759 = vmatpush.xpose.msra.mxu0 0.0
    %760 = vmatpush.xpose.msra.mxu0 0.0
    %761 = vmatpush.xpose.msra.mxu0 %v744
    %762 = vmatmul.f32.gmra.mxu0 %v742
    %v763 = vpop.f32.mrf.mxu0
    %v764 = vadd.f32 0.0, %v763
    %765 = vdwg.mxu0
    %767 = vrot.lane.b32.xlu0 %v737, 96
    %v768 = vpop.permute.xlu0 %767
    %v769 = vsel %vm171, %v737, 0
    %v771 = vsel %vm171, %v768, 0
    %773 = vmatpush.xpose.msra.mxu0 0.0
    %774 = vmatpush.xpose.msra.mxu0 0.0
    %775 = vmatpush.xpose.msra.mxu0 0.0
    %776 = vmatpush.xpose.msra.mxu0 0.0
    %777 = vmatpush.xpose.msra.mxu0 0.0
    %778 = vmatpush.xpose.msra.mxu0 0.0
    %779 = vmatpush.xpose.msra.mxu0 0.0
    %780 = vmatpush.xpose.msra.mxu0 0.0
    %781 = vmatpush.xpose.msra.mxu0 0.0
    %782 = vmatpush.xpose.msra.mxu0 0.0
    %783 = vmatpush.xpose.msra.mxu0 0.0
    %784 = vmatpush.xpose.msra.mxu0 0.0
    %785 = vmatpush.xpose.msra.mxu0 0.0
    %786 = vmatpush.xpose.msra.mxu0 0.0
    %787 = vmatpush.xpose.msra.mxu0 0.0
    %788 = vmatpush.xpose.msra.mxu0 %v771
    %789 = vmatmul.f32.gmra.mxu0 %v769
    %v790 = vpop.f32.mrf.mxu0
    %v791 = vadd.f32 0.0, %v790
    %792 = vdwg.mxu0
    %v793 = vmul.f32 %v764, 0.25
    %v794 = vmul.f32 %v791, 0.25
    %v795 = vadd.f32 %v793, %v225
    %v796 = vadd.f32 %v794, %v226
    %v797 = vsel %vm231, %v795, -inf
    %798 = vmax.xlane.f32.xlu0 %v797
    %v799 = vpop.xlane.xlu0 %798
    %v800 = vsel %vm231, %v796, -inf
    %801 = vmax.xlane.f32.xlu0 %v800
    %v802 = vpop.xlane.xlu0 %801
    %v803 = vsub.f32 %v795, %v799
    %v804 = vsub.f32 %v796, %v802
    %v805 = vmul.f32 %v803, 1.442695
    %v806 = vpow.pop %v805
    %v807 = vmul.f32 %v804, 1.442695
    %v808 = vpow.pop %v807
    %v809 = vsel %vm231, %v806, 0.0
    %810 = vadd.xlane.f32.xlu0 %v809
    %v811 = vpop.xlane.xlu0 %810
    %v812 = vsel %vm231, %v808, 0.0
    %813 = vadd.xlane.f32.xlu0 %v812
    %v814 = vpop.xlane.xlu0 %813
    %v815 = vrcp.pop %v811
    %v816 = vrcp.pop %v814
    %v817 = vmul.f32 %v806, %v815
    %v818 = vmul.f32 %v808, %v816
    %819 = vrot.lane.b32.xlu0 %v734, 64
    %v820 = vpop.permute.xlu0 %819
    %v823 = vsel %vm231, %v817, 0
    %825 = vmatpush.msra.mxu0 0.0
    %826 = vmatpush.msra.mxu0 0.0
    %827 = vmatpush.msra.mxu0 0.0
    %828 = vmatpush.msra.mxu0 0.0
    %829 = vmatpush.msra.mxu0 0.0
    %830 = vmatpush.msra.mxu0 0.0
    %831 = vmatpush.msra.mxu0 0.0
    %832 = vmatpush.msra.mxu0 0.0
    %833 = vmatpush.msra.mxu0 0.0
    %834 = vmatpush.msra.mxu0 0.0
    %835 = vmatpush.msra.mxu0 0.0
    %836 = vmatpush.msra.mxu0 0.0
    %837 = vmatpush.msra.mxu0 0.0
    %838 = vmatpush.msra.mxu0 0.0
    %839 = vmatpush.msra.mxu0 0.0
    %840 = vmatpush.msra.mxu0 %v820
    %841 = vmatmul.f32.gmra.mxu0 %v823
    %v842 = vpop.f32.mrf.mxu0
    %v843 = vadd.f32 0.0, %v842
    %844 = vdwg.mxu0
    %845 = vrot.lane.b32.xlu0 %v737, 64
    %v846 = vpop.permute.xlu0 %845
    %v849 = vsel %vm231, %v818, 0
    %851 = vmatpush.msra.mxu0 0.0
    %852 = vmatpush.msra.mxu0 0.0
    %853 = vmatpush.msra.mxu0 0.0
    %854 = vmatpush.msra.mxu0 0.0
    %855 = vmatpush.msra.mxu0 0.0
    %856 = vmatpush.msra.mxu0 0.0
    %857 = vmatpush.msra.mxu0 0.0
    %858 = vmatpush.msra.mxu0 0.0
    %859 = vmatpush.msra.mxu0 0.0
    %860 = vmatpush.msra.mxu0 0.0
    %861 = vmatpush.msra.mxu0 0.0
    %862 = vmatpush.msra.mxu0 0.0
    %863 = vmatpush.msra.mxu0 0.0
    %864 = vmatpush.msra.mxu0 0.0
    %865 = vmatpush.msra.mxu0 0.0
    %866 = vmatpush.msra.mxu0 %v846
    %867 = vmatmul.f32.gmra.mxu0 %v849
    %v868 = vpop.f32.mrf.mxu0
    %v869 = vadd.f32 0.0, %v868
    %870 = vdwg.mxu0
    %871 = vrot.lane.b32.xlu0 %v734, 112
    %v872 = vpop.permute.xlu0 %871
    %873 = vrot.lane.b32.xlu0 %v734, 80
    %v874 = vpop.permute.xlu0 %873
    %v875 = vsel %vm171, %v872, 0
    %v877 = vsel %vm171, %v874, 0
    %879 = vmatpush.xpose.msra.mxu0 0.0
    %880 = vmatpush.xpose.msra.mxu0 0.0
    %881 = vmatpush.xpose.msra.mxu0 0.0
    %882 = vmatpush.xpose.msra.mxu0 0.0
    %883 = vmatpush.xpose.msra.mxu0 0.0
    %884 = vmatpush.xpose.msra.mxu0 0.0
    %885 = vmatpush.xpose.msra.mxu0 0.0
    %886 = vmatpush.xpose.msra.mxu0 0.0
    %887 = vmatpush.xpose.msra.mxu0 0.0
    %888 = vmatpush.xpose.msra.mxu0 0.0
    %889 = vmatpush.xpose.msra.mxu0 0.0
    %890 = vmatpush.xpose.msra.mxu0 0.0
    %891 = vmatpush.xpose.msra.mxu0 0.0
    %892 = vmatpush.xpose.msra.mxu0 0.0
    %893 = vmatpush.xpose.msra.mxu0 0.0
    %894 = vmatpush.xpose.msra.mxu0 %v877
    %895 = vmatmul.f32.gmra.mxu0 %v875
    %v896 = vpop.f32.mrf.mxu0
    %v897 = vadd.f32 0.0, %v896
    %898 = vdwg.mxu0
    %899 = vrot.lane.b32.xlu0 %v737, 112
    %v900 = vpop.permute.xlu0 %899
    %901 = vrot.lane.b32.xlu0 %v737, 80
    %v902 = vpop.permute.xlu0 %901
    %v903 = vsel %vm171, %v900, 0
    %v905 = vsel %vm171, %v902, 0
    %907 = vmatpush.xpose.msra.mxu0 0.0
    %908 = vmatpush.xpose.msra.mxu0 0.0
    %909 = vmatpush.xpose.msra.mxu0 0.0
    %910 = vmatpush.xpose.msra.mxu0 0.0
    %911 = vmatpush.xpose.msra.mxu0 0.0
    %912 = vmatpush.xpose.msra.mxu0 0.0
    %913 = vmatpush.xpose.msra.mxu0 0.0
    %914 = vmatpush.xpose.msra.mxu0 0.0
    %915 = vmatpush.xpose.msra.mxu0 0.0
    %916 = vmatpush.xpose.msra.mxu0 0.0
    %917 = vmatpush.xpose.msra.mxu0 0.0
    %918 = vmatpush.xpose.msra.mxu0 0.0
    %919 = vmatpush.xpose.msra.mxu0 0.0
    %920 = vmatpush.xpose.msra.mxu0 0.0
    %921 = vmatpush.xpose.msra.mxu0 0.0
    %922 = vmatpush.xpose.msra.mxu0 %v905
    %923 = vmatmul.f32.gmra.mxu0 %v903
    %v924 = vpop.f32.mrf.mxu0
    %v925 = vadd.f32 0.0, %v924
    %926 = vdwg.mxu0
    %v927 = vmul.f32 %v897, 0.25
    %v928 = vmul.f32 %v925, 0.25
    %v929 = vadd.f32 %v927, %v225
    %v930 = vadd.f32 %v928, %v226
    %v931 = vsel %vm231, %v929, -inf
    %932 = vmax.xlane.f32.xlu0 %v931
    %v933 = vpop.xlane.xlu0 %932
    %v934 = vsel %vm231, %v930, -inf
    %935 = vmax.xlane.f32.xlu0 %v934
    %v936 = vpop.xlane.xlu0 %935
    %v937 = vsub.f32 %v929, %v933
    %v938 = vsub.f32 %v930, %v936
    %v939 = vmul.f32 %v937, 1.442695
    %v940 = vpow.pop %v939
    %v941 = vmul.f32 %v938, 1.442695
    %v942 = vpow.pop %v941
    %v943 = vsel %vm231, %v940, 0.0
    %944 = vadd.xlane.f32.xlu0 %v943
    %v945 = vpop.xlane.xlu0 %944
    %v946 = vsel %vm231, %v942, 0.0
    %947 = vadd.xlane.f32.xlu0 %v946
    %v948 = vpop.xlane.xlu0 %947
    %v949 = vrcp.pop %v945
    %v950 = vrcp.pop %v948
    %v951 = vmul.f32 %v940, %v949
    %v952 = vmul.f32 %v942, %v950
    %953 = vrot.lane.b32.xlu0 %v734, 48
    %v954 = vpop.permute.xlu0 %953
    %v957 = vsel %vm231, %v951, 0
    %959 = vmatpush.msra.mxu0 0.0
    %960 = vmatpush.msra.mxu0 0.0
    %961 = vmatpush.msra.mxu0 0.0
    %962 = vmatpush.msra.mxu0 0.0
    %963 = vmatpush.msra.mxu0 0.0
    %964 = vmatpush.msra.mxu0 0.0
    %965 = vmatpush.msra.mxu0 0.0
    %966 = vmatpush.msra.mxu0 0.0
    %967 = vmatpush.msra.mxu0 0.0
    %968 = vmatpush.msra.mxu0 0.0
    %969 = vmatpush.msra.mxu0 0.0
    %970 = vmatpush.msra.mxu0 0.0
    %971 = vmatpush.msra.mxu0 0.0
    %972 = vmatpush.msra.mxu0 0.0
    %973 = vmatpush.msra.mxu0 0.0
    %974 = vmatpush.msra.mxu0 %v954
    %975 = vmatmul.f32.gmra.mxu0 %v957
    %v976 = vpop.f32.mrf.mxu0
    %v977 = vadd.f32 0.0, %v976
    %978 = vdwg.mxu0
    %979 = vrot.lane.b32.xlu0 %v737, 48
    %v980 = vpop.permute.xlu0 %979
    %v983 = vsel %vm231, %v952, 0
    %985 = vmatpush.msra.mxu0 0.0
    %986 = vmatpush.msra.mxu0 0.0
    %987 = vmatpush.msra.mxu0 0.0
    %988 = vmatpush.msra.mxu0 0.0
    %989 = vmatpush.msra.mxu0 0.0
    %990 = vmatpush.msra.mxu0 0.0
    %991 = vmatpush.msra.mxu0 0.0
    %992 = vmatpush.msra.mxu0 0.0
    %993 = vmatpush.msra.mxu0 0.0
    %994 = vmatpush.msra.mxu0 0.0
    %995 = vmatpush.msra.mxu0 0.0
    %996 = vmatpush.msra.mxu0 0.0
    %997 = vmatpush.msra.mxu0 0.0
    %998 = vmatpush.msra.mxu0 0.0
    %999 = vmatpush.msra.mxu0 0.0
    %1000 = vmatpush.msra.mxu0 %v980
    %1001 = vmatmul.f32.gmra.mxu0 %v983
    %v1002 = vpop.f32.mrf.mxu0
    %v1003 = vadd.f32 0.0, %v1002
    %1004 = vdwg.mxu0
    %1007 = vrot.lane.b32.xlu0 %v977, 16
    %v1008 = vpop.permute.xlu0 %1007
    %1009 = vrot.lane.b32.xlu0 %v1003, 16
    %v1010 = vpop.permute.xlu0 %1009
    %v1013 = vsel %vm171, %v843, %v1008
    %v1014 = vsel %vm171, %v869, %v1010
    %s1015 = scalar_lea.vmem %s6, 32
    %v1016 = vld [vmem:[%s1015] sm:$0xff]
    %v1017 = vld [vmem:[%s1015 + $0x8] sm:$0xff]
    %v1018 = vld [vmem:[%s1015 + $0x10] sm:$0xff]
    %v1019 = vld [vmem:[%s1015 + $0x18] sm:$0xff]
    %s1020 = scalar_lea.vmem %s7, 1
    %v1021 = vld [vmem:[%s1020] sm:$0x1]
    %v1023 = vperm.slane %v1021, 0
    %v1026 = vsel %vm69, %v1013, 0
    %v1029 = vsel %vm69, %v1014, 0
    %1031 = vmatpush.msra.mxu0 0.0
    %1032 = vmatpush.msra.mxu0 0.0
    %1033 = vmatpush.msra.mxu0 0.0
    %1034 = vmatpush.msra.mxu0 0.0
    %1035 = vmatpush.msra.mxu0 0.0
    %1036 = vmatpush.msra.mxu0 0.0
    %1037 = vmatpush.msra.mxu0 0.0
    %1038 = vmatpush.msra.mxu0 0.0
    %1039 = vmatpush.msra.mxu0 0.0
    %1040 = vmatpush.msra.mxu0 0.0
    %1041 = vmatpush.msra.mxu0 0.0
    %1042 = vmatpush.msra.mxu0 0.0
    %1043 = vmatpush.msra.mxu0 %v1019
    %1044 = vmatpush.msra.mxu0 %v1018
    %1045 = vmatpush.msra.mxu0 %v1017
    %1046 = vmatpush.msra.mxu0 %v1016
    %1047 = vmatmul.f32.gmra.mxu0 %v1026
    %v1048 = vpop.f32.mrf.mxu0
    %v1049 = vadd.f32 %v1023, %v1048
    %1050 = vmatmul.f32.gmra.mxu0 %v1029
    %v1051 = vpop.f32.mrf.mxu0
    %v1052 = vadd.f32 %v1023, %v1051
    %1053 = vdwg.mxu0
    %v1054 = vadd.f32 %v698, %v1049
    %v1055 = vadd.f32 %v699, %v1052
    %s1056 = scalar_lea.vmem %s8, 1
    %v1057 = vld [vmem:[%s1056] sm:$0x1]
    %s1058 = scalar_lea.vmem %s9, 1
    %v1059 = vld [vmem:[%s1058] sm:$0x1]
    %v1060 = vsel %vm69, %v1054, 0.0
    %1061 = vadd.xlane.f32.xlu0 %v1060
    %v1062 = vpop.xlane.xlu0 %1061
    %v1063 = vsel %vm69, %v1055, 0.0
    %1064 = vadd.xlane.f32.xlu0 %v1063
    %v1065 = vpop.xlane.xlu0 %1064
    %v1066 = vmul.f32 %v1062, %v82
    %v1067 = vmul.f32 %v1065, %v82
    %v1068 = vsub.f32 %v1054, %v1066
    %v1069 = vsub.f32 %v1055, %v1067
    %v1070 = vmul.f32 %v1068, %v1068
    %v1071 = vmul.f32 %v1069, %v1069
    %v1072 = vsel %vm69, %v1070, 0.0
    %1073 = vadd.xlane.f32.xlu0 %v1072
    %v1074 = vpop.xlane.xlu0 %1073
    %v1075 = vsel %vm69, %v1071, 0.0
    %1076 = vadd.xlane.f32.xlu0 %v1075
    %v1077 = vpop.xlane.xlu0 %1076
    %v1078 = vmul.f32 %v1074, %v82
    %v1079 = vmul.f32 %v1077, %v82
    %v1080 = vadd.f32 %v1078, 1e-12
    %v1081 = vadd.f32 %v1079, 1e-12
    %v1082 = vrsqrt.pop %v1080
    %v1083 = vmul.f32 %v1082, %v1080
    %v1084 = vmul.f32 %v1083, %v1082
    %v1085 = vmul.f32 0.5, %v1084
    %v1086 = vsub.f32 1.5, %v1085
    %v1087 = vmul.f32 %v1082, %v1086
    %vm1088 = vweird.f32 %v1080
    %vm1089 = vweird.f32 %v1082
    %vm1090 = vmor %vm1088, %vm1089
    %v1091 = vsel %vm1090, %v1082, %v1087
    %v1092 = vrsqrt.pop %v1081
    %v1093 = vmul.f32 %v1092, %v1081
    %v1094 = vmul.f32 %v1093, %v1092
    %v1095 = vmul.f32 0.5, %v1094
    %v1096 = vsub.f32 1.5, %v1095
    %v1097 = vmul.f32 %v1092, %v1096
    %vm1098 = vweird.f32 %v1081
    %vm1099 = vweird.f32 %v1092
    %vm1100 = vmor %vm1098, %vm1099
    %v1101 = vsel %vm1100, %v1092, %v1097
    %v1102 = vmul.f32 %v1068, %v1091
    %v1103 = vmul.f32 %v1069, %v1101
    %v1105 = vperm.slane %v1057, 0
    %v1107 = vmul.f32 %v1102, %v1105
    %v1108 = vmul.f32 %v1103, %v1105
    %v1110 = vperm.slane %v1059, 0
    %v1112 = vadd.f32 %v1107, %v1110
    %v1113 = vadd.f32 %v1108, %v1110
    %s1114 = scalar_lea.vmem %s10, 32
    %v1115 = vld [vmem:[%s1114] sm:$0xff]
    %v1116 = vld [vmem:[%s1114 + $0x8] sm:$0xff]
    %v1117 = vld [vmem:[%s1114 + $0x10] sm:$0xff]
    %v1118 = vld [vmem:[%s1114 + $0x18] sm:$0xff]
    %s1119 = scalar_lea.vmem %s11, 1
    %v1120 = vld [vmem:[%s1119] sm:$0x1]
    %v1122 = vperm.slane %v1120, 0
    %v1125 = vsel %vm69, %v1112, 0
    %v1128 = vsel %vm69, %v1113, 0
    %1130 = vmatpush.msra.mxu0 0.0
    %1131 = vmatpush.msra.mxu0 0.0
    %1132 = vmatpush.msra.mxu0 0.0
    %1133 = vmatpush.msra.mxu0 0.0
    %1134 = vmatpush.msra.mxu0 0.0
    %1135 = vmatpush.msra.mxu0 0.0
    %1136 = vmatpush.msra.mxu0 0.0
    %1137 = vmatpush.msra.mxu0 0.0
    %1138 = vmatpush.msra.mxu0 0.0
    %1139 = vmatpush.msra.mxu0 0.0
    %1140 = vmatpush.msra.mxu0 0.0
    %1141 = vmatpush.msra.mxu0 0.0
    %1142 = vmatpush.msra.mxu0 %v1118
    %1143 = vmatpush.msra.mxu0 %v1117
    %1144 = vmatpush.msra.mxu0 %v1116
    %1145 = vmatpush.msra.mxu0 %v1115
    %1146 = vmatmul.f32.gmra.mxu0 %v1125
    %v1147 = vpop.f32.mrf.mxu0
    %v1148 = vadd.f32 %v1122, %v1147
    %1149 = vmatmul.f32.gmra.mxu0 %v1128
    %v1150 = vpop.f32.mrf.mxu0
    %v1151 = vadd.f32 %v1122, %v1150
    %1152 = vdwg.mxu0
    %v1153 = vmul.f32 %v1148, %v1148
    %v1154 = vmul.f32 %v1151, %v1151
    %v1155 = vmul.f32 %v1148, %v1153
    %v1156 = vmul.f32 %v1151, %v1154
    %v1157 = vmul.f32 %v1155, 0.044715
    %v1158 = vmul.f32 %v1156, 0.044715
    %v1159 = vadd.f32 %v1148, %v1157
    %v1160 = vadd.f32 %v1151, %v1158
    %v1161 = vmul.f32 %v1159, 0.7978846
    %v1162 = vmul.f32 %v1160, 0.7978846
    %v1163 = vtanh.pop %v1161
    %v1164 = vtanh.pop %v1162
    %v1165 = vadd.f32 %v1163, 1.0
    %v1166 = vadd.f32 %v1164, 1.0
    %v1167 = vmul.f32 %v1165, 0.5
    %v1168 = vmul.f32 %v1166, 0.5
    %v1169 = vmul.f32 %v1148, %v1167
    %v1170 = vmul.f32 %v1151, %v1168
    %s1171 = scalar_lea.vmem %s12, 64
    %v1172 = vld [vmem:[%s1171] sm:$0xff]
    %v1173 = vld [vmem:[%s1171 + $0x8] sm:$0xff]
    %v1174 = vld [vmem:[%s1171 + $0x10] sm:$0xff]
    %v1175 = vld [vmem:[%s1171 + $0x18] sm:$0xff]
    %v1176 = vld [vmem:[%s1171 + $0x20] sm:$0xff]
    %v1177 = vld [vmem:[%s1171 + $0x28] sm:$0xff]
    %v1178 = vld [vmem:[%s1171 + $0x30] sm:$0xff]
    %v1179 = vld [vmem:[%s1171 + $0x38] sm:$0xff]
    %s1180 = scalar_lea.vmem %s13, 1
    %v1181 = vld [vmem:[%s1180] sm:$0x1]
    %v1183 = vperm.slane %v1181, 0
    %v1186 = vsel %vm612, %v1169, 0
    %v1189 = vsel %vm612, %v1170, 0
    %1191 = vmatpush.msra.mxu0 0.0
    %1192 = vmatpush.msra.mxu0 0.0
    %1193 = vmatpush.msra.mxu0 0.0
    %1194 = vmatpush.msra.mxu0 0.0
    %1195 = vmatpush.msra.mxu0 0.0
    %1196 = vmatpush.msra.mxu0 0.0
    %1197 = vmatpush.msra.mxu0 0.0
    %1198 = vmatpush.msra.mxu0 0.0
    %1199 = vmatpush.msra.mxu0 %v1179
    %1200 = vmatpush.msra.mxu0 %v1178
    %1201 = vmatpush.msra.mxu0 %v1177
    %1202 = vmatpush.msra.mxu0 %v1176
    %1203 = vmatpush.msra.mxu0 %v1175
    %1204 = vmatpush.msra.mxu0 %v1174
    %1205 = vmatpush.msra.mxu0 %v1173
    %1206 = vmatpush.msra.mxu0 %v1172
    %1207 = vmatmul.f32.gmra.mxu0 %v1186
    %v1208 = vpop.f32.mrf.mxu0
    %v1209 = vadd.f32 %v1183, %v1208
    %1210 = vmatmul.f32.gmra.mxu0 %v1189
    %v1211 = vpop.f32.mrf.mxu0
    %v1212 = vadd.f32 %v1183, %v1211
    %1213 = vdwg.mxu0
    %v1214 = vadd.f32 %v1112, %v1209
    %v1215 = vadd.f32 %v1113, %v1212
    %s1216 = scalar_lea.vmem %s14, 1
    %v1217 = vld [vmem:[%s1216] sm:$0x1]
    %s1218 = scalar_lea.vmem %s15, 1
    %v1219 = vld [vmem:[%s1218] sm:$0x1]
    %v1220 = vsel %vm69, %v1214, 0.0
    %1221 = vadd.xlane.f32.xlu0 %v1220
    %v1222 = vpop.xlane.xlu0 %1221
    %v1223 = vsel %vm69, %v1215, 0.0
    %1224 = vadd.xlane.f32.xlu0 %v1223
    %v1225 = vpop.xlane.xlu0 %1224
    %v1226 = vmul.f32 %v1222, %v82
    %v1227 = vmul.f32 %v1225, %v82
    %v1228 = vsub.f32 %v1214, %v1226
    %v1229 = vsub.f32 %v1215, %v1227
    %v1230 = vmul.f32 %v1228, %v1228
    %v1231 = vmul.f32 %v1229, %v1229
    %v1232 = vsel %vm69, %v1230, 0.0
    %1233 = vadd.xlane.f32.xlu0 %v1232
    %v1234 = vpop.xlane.xlu0 %1233
    %v1235 = vsel %vm69, %v1231, 0.0
    %1236 = vadd.xlane.f32.xlu0 %v1235
    %v1237 = vpop.xlane.xlu0 %1236
    %v1238 = vmul.f32 %v1234, %v82
    %v1239 = vmul.f32 %v1237, %v82
    %v1240 = vadd.f32 %v1238, 1e-12
    %v1241 = vadd.f32 %v1239, 1e-12
    %v1242 = vrsqrt.pop %v1240
    %v1243 = vmul.f32 %v1242, %v1240
    %v1244 = vmul.f32 %v1243, %v1242
    %v1245 = vmul.f32 0.5, %v1244
    %v1246 = vsub.f32 1.5, %v1245
    %v1247 = vmul.f32 %v1242, %v1246
    %vm1248 = vweird.f32 %v1240
    %vm1249 = vweird.f32 %v1242
    %vm1250 = vmor %vm1248, %vm1249
    %v1251 = vsel %vm1250, %v1242, %v1247
    %v1252 = vrsqrt.pop %v1241
    %v1253 = vmul.f32 %v1252, %v1241
    %v1254 = vmul.f32 %v1253, %v1252
    %v1255 = vmul.f32 0.5, %v1254
    %v1256 = vsub.f32 1.5, %v1255
    %v1257 = vmul.f32 %v1252, %v1256
    %vm1258 = vweird.f32 %v1241
    %vm1259 = vweird.f32 %v1252
    %vm1260 = vmor %vm1258, %vm1259
    %v1261 = vsel %vm1260, %v1252, %v1257
    %v1262 = vmul.f32 %v1228, %v1251
    %v1263 = vmul.f32 %v1229, %v1261
    %v1265 = vperm.slane %v1217, 0
    %v1267 = vmul.f32 %v1262, %v1265
    %v1268 = vmul.f32 %v1263, %v1265
    %v1270 = vperm.slane %v1219, 0
    %v1272 = vadd.f32 %v1267, %v1270
    %v1273 = vadd.f32 %v1268, %v1270
    %v1274 = vperm.slane %v60, 0
    %v1275 = vlaneseq
    %v1276 = vshrl.u32 %v1275, 7
    %1278 = vset.pattern.permute.xlu0 %v1276
    %1279 = vperm.xlu0 %1278, %v1274
    %v1280 = vpop.permute.xlu0 %1279
    %v1281 = vperm.slane %v60, 1
    %v1282 = vlaneseq
    %v1283 = vshrl.u32 %v1282, 7
    %1285 = vset.pattern.permute.xlu0 %v1283
    %1286 = vperm.xlu0 %1285, %v1281
    %v1287 = vpop.permute.xlu0 %1286
    %v1288 = vmul.f32 %v1272, %v1280
    %v1289 = vmul.f32 %v1273, %v1287
    %v1290 = vsel %vm69, %v1288, 0.0
    %v1291 = vrot.slane %v1290, 4
    %v1292 = vadd.f32 %v1290, %v1291
    %v1293 = vrot.slane %v1292, 2
    %v1294 = vadd.f32 %v1292, %v1293
    %v1295 = vrot.slane %v1294, 1
    %v1296 = vadd.f32 %v1294, %v1295
    %v1297 = vsel %vm69, %v1289, 0.0
    %v1298 = vrot.slane %v1297, 4
    %v1299 = vadd.f32 %v1297, %v1298
    %v1300 = vrot.slane %v1299, 2
    %v1301 = vadd.f32 %v1299, %v1300
    %v1302 = vrot.slane %v1301, 1
    %v1303 = vadd.f32 %v1301, %v1302
    %vm1304 = vcmask 58368
    %v1305 = vsel %vm1304, %v60, 0.0
    %1306 = vadd.xlane.f32.xlu0 %v1305
    %v1307 = vpop.xlane.xlu0 %1306
    %v1308 = vmax.f32 %v1307, 1e-09
    %v1310 = vrot.slane %v1308, 1
    %v1313 = vrcp.pop %v1308
    %v1314 = vmul.f32 %v1308, %v1313
    %v1315 = vsub.f32 1.0, %v1314
    %v1316 = vmul.f32 %v1313, %v1315
    %v1317 = vadd.f32 %v1313, %v1316
    %vm1318 = vweird.f32 %v1308
    %vm1319 = vweird.f32 %v1313
    %vm1320 = vmor %vm1318, %vm1319
    %v1321 = vsel %vm1320, %v1313, %v1317
    %v1322 = vand.u32 2147483647, %v1308
    %vm1323 = vcmp.eq.f32.partialorder %v1322, 8.507059e+37
    %v1324 = vand.u32 %v1308, 2147483648
    %v1325 = vor.u32 1.1754944e-38, %v1324
    %v1326 = vsel %vm1323, %v1325, %v1321
    %v1327 = vmul.f32 %v1296, %v1326
    %v1328 = vrcp.pop %v1310
    %v1329 = vmul.f32 %v1310, %v1328
    %v1330 = vsub.f32 1.0, %v1329
    %v1331 = vmul.f32 %v1328, %v1330
    %v1332 = vadd.f32 %v1328, %v1331
    %vm1333 = vweird.f32 %v1310
    %vm1334 = vweird.f32 %v1328
    %vm1335 = vmor %vm1333, %vm1334
    %v1336 = vsel %vm1335, %v1328, %v1332
    %v1337 = vand.u32 2147483647, %v1310
    %vm1338 = vcmp.eq.f32.partialorder %v1337, 8.507059e+37
    %v1339 = vand.u32 %v1310, 2147483648
    %v1340 = vor.u32 1.1754944e-38, %v1339
    %v1341 = vsel %vm1338, %v1340, %v1336
    %v1342 = vmul.f32 %v1303, %v1341
    %v1343 = vld [vmem:[%s16] sm:$0xff]
    %v1344 = vld [vmem:[%s16 + $0x8] sm:$0xff]
    %v1345 = vld [vmem:[%s16 + $0x10] sm:$0xff]
    %v1346 = vld [vmem:[%s16 + $0x18] sm:$0xff]
    %v1347 = vld [vmem:[%s17] sm:$0x1]
    %v1349 = vperm.slane %v1347, 0
    %v1353 = vrot.slane %v1342, 7
    %vm1354 = vcmask 1041409
    %v1355 = vsel %vm1354, %v1353, %v1327
    %v1356 = vsel %vm69, %v1355, 0
    %1358 = vmatpush.msra.mxu0 0.0
    %1359 = vmatpush.msra.mxu0 0.0
    %1360 = vmatpush.msra.mxu0 0.0
    %1361 = vmatpush.msra.mxu0 0.0
    %1362 = vmatpush.msra.mxu0 0.0
    %1363 = vmatpush.msra.mxu0 0.0
    %1364 = vmatpush.msra.mxu0 0.0
    %1365 = vmatpush.msra.mxu0 0.0
    %1366 = vmatpush.msra.mxu0 0.0
    %1367 = vmatpush.msra.mxu0 0.0
    %1368 = vmatpush.msra.mxu0 0.0
    %1369 = vmatpush.msra.mxu0 0.0
    %1370 = vmatpush.msra.mxu0 %v1346
    %1371 = vmatpush.msra.mxu0 %v1345
    %1372 = vmatpush.msra.mxu0 %v1344
    %1373 = vmatpush.msra.mxu0 %v1343
    %1374 = vmatmul.f32.gmra.mxu0 %v1356
    %v1375 = vpop.f32.mrf.mxu0
    %v1376 = vadd.f32 %v1349, %v1375
    %1377 = vdwg.mxu0
    %vm1378 = vcmask 287744
    %1379 = vst.msk [vmem:[#allocation2] sm:$0x3] %vm1378, %v1376
    // Predicated region
    $region74: #{custom_bert_mean_forward.1} parent=1 // pred_check
      _
    $region75: #{custom_bert_mean_forward.1} parent=1 // pred_check_branch
      %1381 = sbr.rel (0) target = $region77
    $region76: #{custom_bert_mean_forward.1} parent=1 // pred_region
      %1383 = vsyncadd [#allocation3], 0
      %s1385 = sshll.u32 [#allocation2], 4
      %s1386 = int_to_ptr.vmem [resolvable:$true] %s1385
      %s1387 = sshll.u32 %s18, 4
      %s1388 = int_to_ptr.hbm [resolvable:$true] %s1387
      %1390 = dma.vmem_to_hbm [thread:$0]  %s1386, 32, %s1388, [#allocation3]
    $region77: #{custom_bert_mean_forward.1} parent=1 // pred_fallthru
      _
    // Predicated region
    $region78: #{custom_bert_mean_forward.1} parent=1 // pred_check
      _
    $region79: #{custom_bert_mean_forward.1} parent=1 // pred_check_branch
      %1392 = sbr.rel (0) target = $region81
    $region80: #{custom_bert_mean_forward.1} parent=1 // pred_region
      %1394 = dma.done [#allocation3], 32
    $region81: #{custom_bert_mean_forward.1} parent=1 // pred_fallthru
      _
    %1395 = vsyncpa [#allocation3], 1

</llo_original>
